<compile_context>
chip_gen: v6e
topology: v6e:2x2x1
jax: 0.10.0
libtpu: 0.0.40
codegen_flags: <defaults>
</compile_context>

<pallas_src>
import functools

import jax
import jax.numpy as jnp
from jax.experimental import pallas as pl
from jax.experimental.pallas import tpu as pltpu

SR = 60
DT = 1.0 / SR

LANE = 128           # TPU lane width (minor dim of the flattened B*J axis).
MAX_N_SUB = 16       # sublane-tiles per n-block once N is large (bf16-safe).
MIN_N_SUB = 8        # keep full (8,128) f32 tiles even for tiny N.
MAX_TILE_T = 512     # default time steps per grid chunk (sweepable).


# ----------------------------------------------------------------------------
# Kernel factory.  One grid step == one chunk of tile_t time steps; the
# (theta, v = dt*d_theta) state lives in the fori_loop carry (vregs) inside a
# chunk and in a small VMEM scratch across chunks.
# ----------------------------------------------------------------------------
def _make_kernel(tile_t: int, total_t: int, dt: float, speed_mode: bool):
    t_chunks = -(-total_t // tile_t)
    rem = total_t - (t_chunks - 1) * tile_t       # steps in the last chunk
    has_remainder = rem != tile_t
    inv_dt = 1.0 / dt
    f32 = jnp.float32

    def _unroll(n_steps):
        return True if n_steps <= 32 else 8

    def kernel(x_ref, init_ref, p_ref,            # inputs
               out_ref, jstate_ref, mstate_ref,   # outputs
               state_sc):                         # scratch
        t = pl.program_id(1)                      # time-chunk index (inner)
        last = pl.num_programs(1) - 1

        @pl.when(t == 0)
        def _init():
            state_sc[...] = init_ref[...]         # rows: [theta, dt*d_theta]

        # Per-lane constants: loaded once per chunk, kept in vregs.
        m0 = p_ref[0]
        m1 = p_ref[1]
        m0sq = p_ref[2]
        m1sq = p_ref[3]
        dti2 = p_ref[4]                           # dt^2 / inertia
        bdt = p_ref[5]                            # damping / dt
        kpas = p_ref[6]                           # passive joint stiffness

        theta0 = state_sc[0]
        v0 = state_sc[1]                          # v == dt * d_theta

        # Zero-cost static views onto the 4 stacked bf16 input channels.
        f1_ref = x_ref.at[0]
        f2_ref = x_ref.at[1]
        k1_ref = x_ref.at[2]
        k2_ref = x_ref.at[3]

        def body(i, carry):
            theta, v = carry
            f1 = f1_ref[i].astype(f32)            # (N_SUB, 128), full vregs
            f2 = f2_ref[i].astype(f32)
            k1 = k1_ref[i].astype(f32)
            k2 = k2_ref[i].astype(f32)
            tau = f1 * m0 + f2 * m1
            kj = k1 * m0sq + k2 * m1sq + kpas
            a = (tau - kj * theta - bdt * v) * dti2    # == dt^2 * dd_theta
            if speed_mode:                             # explicit Euler
                theta_n = theta + v
                v_n = v + a
            else:                                      # semi-implicit Euler
                v_n = v + a
                theta_n = theta + v_n
            out_ref[i] = theta_n                  # aligned (N_SUB,128) store
            return theta_n, v_n

        def run_chunk(n_steps):
            tf, vf = jax.lax.fori_loop(0, n_steps, body, (theta0, v0),
                                       unroll=_unroll(n_steps))
            # Persist state for the next chunk (VMEM only; no HBM traffic).
            state_sc[0] = tf
            state_sc[1] = vf
            return tf, vf

        def finalize(tf, vf):
            dth = vf * inv_dt
            jstate_ref[0] = tf
            jstate_ref[1] = dth
            mstate_ref[0] = tf * m0
            mstate_ref[1] = tf * m1
            mstate_ref[2] = dth * m0
            mstate_ref[3] = dth * m1

        if has_remainder:
            # Hot path: full, unmasked chunks.
            @pl.when(t != last)
            def _full():
                run_chunk(tile_t)

            # Cold path: the last chunk runs exactly `rem` steps (no masks).
            @pl.when(t == last)
            def _last():
                tf, vf = run_chunk(rem)
                finalize(tf, vf)
        else:
            tf, vf = run_chunk(tile_t)

            @pl.when(t == last)
            def _fin():
                finalize(tf, vf)

    return kernel


# ----------------------------------------------------------------------------
# Wrapper: lane-dense layout prep, parameter folding, pallas_call, unflatten.
# ----------------------------------------------------------------------------
@functools.partial(jax.jit,
                   static_argnames=("dt", "speed_mode", "max_tile_t"))
def phys_joint_forward(x, joint_states, M, phys, *, dt=DT, speed_mode=False,
                       max_tile_t=MAX_TILE_T):
    """x: (B, T, J*4); joint_states: [muscle_states, (B,J,2) state, theta]."""
    B, T, C = x.shape
    J = phys.shape[1]
    assert C == 4 * J
    f32 = jnp.float32

    # ---- N (= B*J) layout: (n_tiles, N_SUB, 128) with full-vreg minor dims.
    N = B * J
    n_sub_needed = -(-N // LANE)
    if n_sub_needed > MAX_N_SUB:
        n_sub = MAX_N_SUB
        n_tiles = -(-n_sub_needed // MAX_N_SUB)
    else:
        n_sub = max(MIN_N_SUB, n_sub_needed)
        n_tiles = 1
    n_sub_pad = n_tiles * n_sub
    n_pad = n_sub_pad * LANE

    # ---- T layout: tile_t steps per chunk.
    tile_t = min(T, max_tile_t)
    t_chunks = -(-T // tile_t)
    t_pad = t_chunks * tile_t

    # Lane-dense stacked input: de-interleave the 4 channels, flatten (B, J)
    # onto the (N_SUB, 128) minor dims, pad, and ship as bf16 (single stream).
    x4 = x.reshape(B, T, J, 4)
    xc = jnp.transpose(x4, (3, 1, 0, 2)).reshape(4, T, N).astype(jnp.bfloat16)
    xs = jnp.pad(xc, ((0, 0), (0, t_pad - T), (0, n_pad - N)))
    xs = xs.reshape(4, t_pad, n_sub_pad, LANE)

    # Initial state rows: [theta, dt * d_theta] flattened over (B*J).
    jstate0 = joint_states[1].astype(f32)                     # (B, J, 2)
    init = jnp.stack([jstate0[..., 0].reshape(N),
                      jstate0[..., 1].reshape(N) * dt], axis=0)
    init = jnp.pad(init, ((0, 0), (0, n_pad - N)))
    init = init.reshape(2, n_sub_pad, LANE)

    # Hoisted per-joint constants, broadcast over batch and flattened.
    m0, m1 = M[:, 0].astype(f32), M[:, 1].astype(f32)
    inertia, b_damp, k_pass = phys[0], phys[1], phys[2]

    def tile_flat(v):
        v = jnp.broadcast_to(v.astype(f32)[None, :], (B, J)).reshape(N)
        return jnp.pad(v, (0, n_pad - N))

    params = jnp.stack([
        tile_flat(m0), tile_flat(m1),
        tile_flat(m0 * m0), tile_flat(m1 * m1),
        tile_flat((dt * dt) / inertia),
        tile_flat(b_damp / dt),
        tile_flat(k_pass)], axis=0).reshape(7, n_sub_pad, LANE)

    out_shapes = (
        jax.ShapeDtypeStruct((t_pad, n_sub_pad, LANE), f32),  # theta per step
        jax.ShapeDtypeStruct((2, n_sub_pad, LANE), f32),      # final joint st.
        jax.ShapeDtypeStruct((4, n_sub_pad, LANE), f32),      # final muscle st.
    )
    grid_spec = pltpu.PrefetchScalarGridSpec(
        num_scalar_prefetch=0,
        grid=(n_tiles, t_chunks),
        in_specs=[
            pl.BlockSpec((4, tile_t, n_sub, LANE), lambda n, t: (0, t, n, 0)),
            pl.BlockSpec((2, n_sub, LANE), lambda n, t: (0, n, 0)),
            pl.BlockSpec((7, n_sub, LANE), lambda n, t: (0, n, 0)),
        ],
        out_specs=[
            pl.BlockSpec((tile_t, n_sub, LANE), lambda n, t: (t, n, 0)),
            pl.BlockSpec((2, n_sub, LANE), lambda n, t: (0, n, 0)),
            pl.BlockSpec((4, n_sub, LANE), lambda n, t: (0, n, 0)),
        ],
        scratch_shapes=[pltpu.VMEM((2, n_sub, LANE), f32)],
    )

    out_flat, jstate_flat, mstate_flat = pl.pallas_call(
        _make_kernel(tile_t, T, dt, speed_mode),
        out_shape=out_shapes,
        grid_spec=grid_spec,
        compiler_params=pltpu.CompilerParams(
            dimension_semantics=("parallel", "arbitrary"),
            # ~24 MiB double-buffered working set at tile_t=512/N_SUB=16;
            # 40 MiB scoped fits v7x's 64 MiB VMEM and raises v5e's 16 MiB.
            vmem_limit_bytes=40 * 1024 * 1024),
    )(xs, init, params)

    # Back to the PyTorch layout (single cheap layout pass in XLA).
    out = jnp.transpose(
        out_flat.reshape(t_pad, n_pad)[:T, :N].reshape(T, B, J), (1, 0, 2))
    jstate_new = jnp.transpose(
        jstate_flat.reshape(2, n_pad)[:, :N].reshape(2, B, J), (1, 2, 0))
    mstate_new = jnp.transpose(
        mstate_flat.reshape(4, n_pad)[:, :N].reshape(2, 2, B, J), (2, 3, 0, 1))
    theta_last = jstate_new[:, :, 0]
    return out, [mstate_new, jstate_new, theta_last]


def get_starting_states(y, M):
    """JAX equivalent of PhysJointModel.get_starting_states."""
    theta = y[:, 0, :]
    d_theta = (y[:, 1, :] - y[:, 0, :]) * SR
    states = jnp.stack([theta, d_theta], axis=2)                # (B, J, 2)
    muscle = states[:, :, :, None] * M[None, :, None, :]        # (B, J, 2, 2)
    return [muscle, states, theta]


def make_params(n_joints):
    """Deterministic Joints parameters (moment arms + inertia/damping/stiff)."""
    M = jnp.stack([jnp.full((n_joints,), 0.05, jnp.float32),
                   jnp.full((n_joints,), -0.05, jnp.float32)], axis=1)  # (J, 2)
    phys = jnp.stack([jnp.full((n_joints,), 0.01, jnp.float32),   # inertia
                      jnp.full((n_joints,), 0.05, jnp.float32),   # damping
                      jnp.full((n_joints,), 0.10, jnp.float32)],  # passive K
                     axis=0)                                       # (3, J)
    return M, phys


# ----------------------------------------------------------------------------
# Pure-JAX reference (straightforward un-folded math, lax.scan).
# ----------------------------------------------------------------------------
def reference_forward(x, joint_states, M, phys, *, dt=DT, speed_mode=False):
    B, T, C = x.shape
    J = phys.shape[1]
    x4 = x.reshape(B, T, J, 4)
    m0, m1 = M[:, 0], M[:, 1]
    inertia, b_damp, k_pass = phys[0], phys[1], phys[2]
    theta0 = joint_states[1][:, :, 0]
    dtheta0 = joint_states[1][:, :, 1]

    def step(carry, xt):
        theta, d_theta = carry
        f1, f2, k1, k2 = xt[:, :, 0], xt[:, :, 1], xt[:, :, 2], xt[:, :, 3]
        tau = f1 * m0 + f2 * m1
        k_joint = k1 * m0 * m0 + k2 * m1 * m1 + k_pass
        dd = (tau - k_joint * theta - b_damp * d_theta) / inertia
        if speed_mode:
            theta_new = theta + dt * d_theta
            d_theta_new = d_theta + dt * dd
        else:
            d_theta_new = d_theta + dt * dd
            theta_new = theta + dt * d_theta_new
        return (theta_new, d_theta_new), theta_new

    (theta_f, dtheta_f), outs = jax.lax.scan(
        step, (theta0, dtheta0), jnp.transpose(x4, (1, 0, 2, 3)))
    out = jnp.transpose(outs, (1, 0, 2))
    jstate = jnp.stack([theta_f, dtheta_f], axis=2)
    mstate = jstate[:, :, :, None] * M[None, :, None, :]
    return out, [mstate, jstate, out[:, -1, :]]


if __name__ == "__main__":
    # ---- Test 1: small shapes, semi-implicit Euler, single time chunk. ----
    B, T, J = 2, 8, 4
    key = jax.random.PRNGKey(0)
    kx, ky = jax.random.split(key)
    x = jax.random.normal(kx, (B, T, 4 * J), dtype=jnp.float32)
    y = jax.random.normal(ky, (B, T, J), dtype=jnp.float32)   # targets for init

    M, phys = make_params(J)
    joint_states = get_starting_states(y, M)

    out, new_states = phys_joint_forward(x, joint_states, M, phys,
                                         dt=DT, speed_mode=False)
    out = jax.block_until_ready(out)
    new_states = [jax.block_until_ready(s) for s in new_states]

    # Kernel streams inputs as bf16; feed the identically-rounded inputs to
    # the f32 reference so only reassociation drift remains.
    x_eff = x.astype(jnp.bfloat16).astype(jnp.float32)
    ref_out, ref_states = reference_forward(x_eff, joint_states, M, phys,
                                            dt=DT, speed_mode=False)
    assert out.shape == (B, T, J)
    assert new_states[0].shape == (B, J, 2, 2)
    assert new_states[1].shape == (B, J, 2)
    assert new_states[2].shape == (B, J)
    tol = dict(atol=1e-4, rtol=1e-4)
    assert jnp.allclose(out, ref_out, **tol)
    assert jnp.allclose(new_states[0], ref_states[0], **tol)
    assert jnp.allclose(new_states[1], ref_states[1], **tol)
    assert jnp.allclose(new_states[2], ref_states[2], **tol)

    # ---- Test 2: multi-chunk + remainder path, padding, speed_mode=True. ----
    B2, T2, J2 = 3, 300, 5
    x2 = jax.random.normal(jax.random.PRNGKey(1), (B2, T2, 4 * J2), jnp.float32)
    y2 = jax.random.normal(jax.random.PRNGKey(2), (B2, T2, J2), jnp.float32)
    M2, phys2 = make_params(J2)
    js2 = get_starting_states(y2, M2)
    out2, ns2 = phys_joint_forward(x2, js2, M2, phys2, dt=DT, speed_mode=True,
                                   max_tile_t=128)            # 128,128,44 chunks
    out2 = jax.block_until_ready(out2)
    x2_eff = x2.astype(jnp.bfloat16).astype(jnp.float32)
    ref_out2, ref_states2 = reference_forward(x2_eff, js2, M2, phys2,
                                              dt=DT, speed_mode=True)
    # 300 sequential fp32 steps with reassociated constants -> looser tol.
    tol2 = dict(atol=1e-3, rtol=1e-3)
    assert out2.shape == (B2, T2, J2)
    assert jnp.allclose(out2, ref_out2, **tol2)
    assert jnp.allclose(ns2[0], ref_states2[0], **tol2)
    assert jnp.allclose(ns2[1], ref_states2[1], **tol2)
    assert jnp.allclose(ns2[2], ref_states2[2], **tol2)

    print("KERNEL_OK")
</pallas_src>

<mosaic_0001>
module attributes {stable_mosaic.version = 11 : i64} {
  func.func @kernel(%arg0: i32, %arg1: i32, %arg2: memref<4x8x8x128xbf16, #tpu.memory_space<vmem>>, %arg3: memref<2x8x128xf32, #tpu.memory_space<vmem>>, %arg4: memref<7x8x128xf32, #tpu.memory_space<vmem>>, %arg5: memref<8x8x128xf32, #tpu.memory_space<vmem>>, %arg6: memref<2x8x128xf32, #tpu.memory_space<vmem>>, %arg7: memref<4x8x128xf32, #tpu.memory_space<vmem>>, %arg8: memref<2x8x128xf32, #tpu.memory_space<vmem>>) attributes {dimension_semantics = [#tpu.dimension_semantics<parallel>, #tpu.dimension_semantics<arbitrary>], iteration_bounds = array<i64: 1, 1>, scalar_prefetch = 0 : i64, scratch_operands = 1 : i64, tpu.core_type = #tpu.core_type<tc>, window_params = [{transform_indices = @transform_0, window_bounds = array<i64: 4, 8, 8, 128>}, {transform_indices = @transform_1, window_bounds = array<i64: 2, 8, 128>}, {transform_indices = @transform_2, window_bounds = array<i64: 7, 8, 128>}, {transform_indices = @transform_3, window_bounds = array<i64: 8, 8, 128>}, {transform_indices = @transform_4, window_bounds = array<i64: 2, 8, 128>}, {transform_indices = @transform_5, window_bounds = array<i64: 4, 8, 128>}]} {
    %c0_i32 = arith.constant 0 : i32
    %0 = arith.cmpi eq, %arg1, %c0_i32 : i32
    %1 = arith.extui %0 : i1 to i32
    %c0_i32_0 = arith.constant 0 : i32
    %2 = arith.cmpi ne, %1, %c0_i32_0 : i32
    scf.if %2 {
      %c0_210 = arith.constant 0 : index
      %c0_211 = arith.constant 0 : index
      %c0_212 = arith.constant 0 : index
      %366 = vector.load %arg3[%c0_210, %c0_211, %c0_212] : memref<2x8x128xf32, #tpu.memory_space<vmem>>, vector<2x8x128xf32>
      %c0_213 = arith.constant 0 : index
      %c0_214 = arith.constant 0 : index
      %c0_215 = arith.constant 0 : index
      %367 = vector.load %arg8[%c0_213, %c0_214, %c0_215] : memref<2x8x128xf32, #tpu.memory_space<vmem>>, vector<2x8x128xf32>
      tpu.vector_store %arg8[%c0_213, %c0_214, %c0_215], %366 {strides = array<i32>} : memref<2x8x128xf32, #tpu.memory_space<vmem>>, vector<2x8x128xf32>,
    } else {
    }
    %c0 = arith.constant 0 : index
    %c0_1 = arith.constant 0 : index
    %c0_2 = arith.constant 0 : index
    %3 = vector.load %arg4[%c0, %c0_1, %c0_2] : memref<7x8x128xf32, #tpu.memory_space<vmem>>, vector<1x8x128xf32>
    %4 = vector.shape_cast %3 : vector<1x8x128xf32> to vector<8x128xf32>
    %c1 = arith.constant 1 : index
    %c0_3 = arith.constant 0 : index
    %c0_4 = arith.constant 0 : index
    %5 = vector.load %arg4[%c1, %c0_3, %c0_4] : memref<7x8x128xf32, #tpu.memory_space<vmem>>, vector<1x8x128xf32>
    %6 = vector.shape_cast %5 : vector<1x8x128xf32> to vector<8x128xf32>
    %c2 = arith.constant 2 : index
    %c0_5 = arith.constant 0 : index
    %c0_6 = arith.constant 0 : index
    %7 = vector.load %arg4[%c2, %c0_5, %c0_6] : memref<7x8x128xf32, #tpu.memory_space<vmem>>, vector<1x8x128xf32>
    %8 = vector.shape_cast %7 : vector<1x8x128xf32> to vector<8x128xf32>
    %c3 = arith.constant 3 : index
    %c0_7 = arith.constant 0 : index
    %c0_8 = arith.constant 0 : index
    %9 = vector.load %arg4[%c3, %c0_7, %c0_8] : memref<7x8x128xf32, #tpu.memory_space<vmem>>, vector<1x8x128xf32>
    %10 = vector.shape_cast %9 : vector<1x8x128xf32> to vector<8x128xf32>
    %c4 = arith.constant 4 : index
    %c0_9 = arith.constant 0 : index
    %c0_10 = arith.constant 0 : index
    %11 = vector.load %arg4[%c4, %c0_9, %c0_10] : memref<7x8x128xf32, #tpu.memory_space<vmem>>, vector<1x8x128xf32>
    %12 = vector.shape_cast %11 : vector<1x8x128xf32> to vector<8x128xf32>
    %c5 = arith.constant 5 : index
    %c0_11 = arith.constant 0 : index
    %c0_12 = arith.constant 0 : index
    %13 = vector.load %arg4[%c5, %c0_11, %c0_12] : memref<7x8x128xf32, #tpu.memory_space<vmem>>, vector<1x8x128xf32>
    %14 = vector.shape_cast %13 : vector<1x8x128xf32> to vector<8x128xf32>
    %c6 = arith.constant 6 : index
    %c0_13 = arith.constant 0 : index
    %c0_14 = arith.constant 0 : index
    %15 = vector.load %arg4[%c6, %c0_13, %c0_14] : memref<7x8x128xf32, #tpu.memory_space<vmem>>, vector<1x8x128xf32>
    %16 = vector.shape_cast %15 : vector<1x8x128xf32> to vector<8x128xf32>
    %c0_15 = arith.constant 0 : index
    %c0_16 = arith.constant 0 : index
    %c0_17 = arith.constant 0 : index
    %17 = vector.load %arg8[%c0_15, %c0_16, %c0_17] : memref<2x8x128xf32, #tpu.memory_space<vmem>>, vector<1x8x128xf32>
    %18 = vector.shape_cast %17 : vector<1x8x128xf32> to vector<8x128xf32>
    %c1_18 = arith.constant 1 : index
    %c0_19 = arith.constant 0 : index
    %c0_20 = arith.constant 0 : index
    %19 = vector.load %arg8[%c1_18, %c0_19, %c0_20] : memref<2x8x128xf32, #tpu.memory_space<vmem>>, vector<1x8x128xf32>
    %20 = vector.shape_cast %19 : vector<1x8x128xf32> to vector<8x128xf32>
    %c0_i32_21 = arith.constant 0 : i32
    %c1_i32 = arith.constant 1 : i32
    %c2_i32 = arith.constant 2 : i32
    %c3_i32 = arith.constant 3 : i32
    %c0_i32_22 = arith.constant 0 : i32
    %c0_i32_23 = arith.constant 0 : i32
    %c0_i32_24 = arith.constant 0 : i32
    %c0_i32_25 = arith.constant 0 : i32
    %21 = tpu.memref_slice %arg2[%c0_i32_21, %c0_i32_23, %c0_i32_24, %c0_i32_25] : memref<4x8x8x128xbf16, #tpu.memory_space<vmem>> -> memref<1x8x8x128xbf16, #tpu.memory_space<vmem>>
    %22 = tpu.memref_squeeze %21 : memref<1x8x8x128xbf16, #tpu.memory_space<vmem>> -> memref<8x8x128xbf16, #tpu.memory_space<vmem>>
    %23 = arith.index_cast %c0_i32_22 : i32 to index
    %c0_26 = arith.constant 0 : index
    %c0_27 = arith.constant 0 : index
    %24 = vector.load %22[%23, %c0_26, %c0_27] : memref<8x8x128xbf16, #tpu.memory_space<vmem>>, vector<1x8x128xbf16>
    %25 = vector.shape_cast %24 : vector<1x8x128xbf16> to vector<8x128xbf16>
    %26 = arith.extf %25 : vector<8x128xbf16> to vector<8x128xf32>
    %c0_i32_28 = arith.constant 0 : i32
    %c0_i32_29 = arith.constant 0 : i32
    %c0_i32_30 = arith.constant 0 : i32
    %27 = tpu.memref_slice %arg2[%c1_i32, %c0_i32_28, %c0_i32_29, %c0_i32_30] : memref<4x8x8x128xbf16, #tpu.memory_space<vmem>> -> memref<1x8x8x128xbf16, #tpu.memory_space<vmem>>
    %28 = tpu.memref_squeeze %27 : memref<1x8x8x128xbf16, #tpu.memory_space<vmem>> -> memref<8x8x128xbf16, #tpu.memory_space<vmem>>
    %29 = arith.index_cast %c0_i32_22 : i32 to index
    %c0_31 = arith.constant 0 : index
    %c0_32 = arith.constant 0 : index
    %30 = vector.load %28[%29, %c0_31, %c0_32] : memref<8x8x128xbf16, #tpu.memory_space<vmem>>, vector<1x8x128xbf16>
    %31 = vector.shape_cast %30 : vector<1x8x128xbf16> to vector<8x128xbf16>
    %32 = arith.extf %31 : vector<8x128xbf16> to vector<8x128xf32>
    %c0_i32_33 = arith.constant 0 : i32
    %c0_i32_34 = arith.constant 0 : i32
    %c0_i32_35 = arith.constant 0 : i32
    %33 = tpu.memref_slice %arg2[%c2_i32, %c0_i32_33, %c0_i32_34, %c0_i32_35] : memref<4x8x8x128xbf16, #tpu.memory_space<vmem>> -> memref<1x8x8x128xbf16, #tpu.memory_space<vmem>>
    %34 = tpu.memref_squeeze %33 : memref<1x8x8x128xbf16, #tpu.memory_space<vmem>> -> memref<8x8x128xbf16, #tpu.memory_space<vmem>>
    %35 = arith.index_cast %c0_i32_22 : i32 to index
    %c0_36 = arith.constant 0 : index
    %c0_37 = arith.constant 0 : index
    %36 = vector.load %34[%35, %c0_36, %c0_37] : memref<8x8x128xbf16, #tpu.memory_space<vmem>>, vector<1x8x128xbf16>
    %37 = vector.shape_cast %36 : vector<1x8x128xbf16> to vector<8x128xbf16>
    %38 = arith.extf %37 : vector<8x128xbf16> to vector<8x128xf32>
    %c0_i32_38 = arith.constant 0 : i32
    %c0_i32_39 = arith.constant 0 : i32
    %c0_i32_40 = arith.constant 0 : i32
    %39 = tpu.memref_slice %arg2[%c3_i32, %c0_i32_38, %c0_i32_39, %c0_i32_40] : memref<4x8x8x128xbf16, #tpu.memory_space<vmem>> -> memref<1x8x8x128xbf16, #tpu.memory_space<vmem>>
    %40 = tpu.memref_squeeze %39 : memref<1x8x8x128xbf16, #tpu.memory_space<vmem>> -> memref<8x8x128xbf16, #tpu.memory_space<vmem>>
    %41 = arith.index_cast %c0_i32_22 : i32 to index
    %c0_41 = arith.constant 0 : index
    %c0_42 = arith.constant 0 : index
    %42 = vector.load %40[%41, %c0_41, %c0_42] : memref<8x8x128xbf16, #tpu.memory_space<vmem>>, vector<1x8x128xbf16>
    %43 = vector.shape_cast %42 : vector<1x8x128xbf16> to vector<8x128xbf16>
    %44 = arith.extf %43 : vector<8x128xbf16> to vector<8x128xf32>
    %45 = arith.mulf %26, %4 : vector<8x128xf32>
    %46 = arith.mulf %32, %6 : vector<8x128xf32>
    %47 = arith.addf %45, %46 : vector<8x128xf32>
    %48 = arith.mulf %38, %8 : vector<8x128xf32>
    %49 = arith.mulf %44, %10 : vector<8x128xf32>
    %50 = arith.addf %48, %49 : vector<8x128xf32>
    %51 = arith.addf %50, %16 : vector<8x128xf32>
    %52 = arith.mulf %51, %18 : vector<8x128xf32>
    %53 = arith.subf %47, %52 : vector<8x128xf32>
    %54 = arith.mulf %14, %20 : vector<8x128xf32>
    %55 = arith.subf %53, %54 : vector<8x128xf32>
    %56 = arith.mulf %55, %12 : vector<8x128xf32>
    %57 = arith.addf %20, %56 : vector<8x128xf32>
    %58 = arith.addf %18, %57 : vector<8x128xf32>
    %59 = arith.index_cast %c0_i32_22 : i32 to index
    %c0_43 = arith.constant 0 : index
    %c0_44 = arith.constant 0 : index
    %60 = vector.load %arg5[%59, %c0_43, %c0_44] : memref<8x8x128xf32, #tpu.memory_space<vmem>>, vector<1x8x128xf32>
    %61 = vector.shape_cast %60 : vector<1x8x128xf32> to vector<8x128xf32>
    %62 = vector.shape_cast %58 : vector<8x128xf32> to vector<1x8x128xf32>
    tpu.vector_store %arg5[%59, %c0_43, %c0_44], %62 {strides = array<i32>} : memref<8x8x128xf32, #tpu.memory_space<vmem>>, vector<1x8x128xf32>,
    %c1_i32_45 = arith.constant 1 : i32
    %c0_i32_46 = arith.constant 0 : i32
    %c0_i32_47 = arith.constant 0 : i32
    %c0_i32_48 = arith.constant 0 : i32
    %63 = tpu.memref_slice %arg2[%c0_i32_21, %c0_i32_46, %c0_i32_47, %c0_i32_48] : memref<4x8x8x128xbf16, #tpu.memory_space<vmem>> -> memref<1x8x8x128xbf16, #tpu.memory_space<vmem>>
    %64 = tpu.memref_squeeze %63 : memref<1x8x8x128xbf16, #tpu.memory_space<vmem>> -> memref<8x8x128xbf16, #tpu.memory_space<vmem>>
    %65 = arith.index_cast %c1_i32_45 : i32 to index
    %c0_49 = arith.constant 0 : index
    %c0_50 = arith.constant 0 : index
    %66 = vector.load %64[%65, %c0_49, %c0_50] : memref<8x8x128xbf16, #tpu.memory_space<vmem>>, vector<1x8x128xbf16>
    %67 = vector.shape_cast %66 : vector<1x8x128xbf16> to vector<8x128xbf16>
    %68 = arith.extf %67 : vector<8x128xbf16> to vector<8x128xf32>
    %c0_i32_51 = arith.constant 0 : i32
    %c0_i32_52 = arith.constant 0 : i32
    %c0_i32_53 = arith.constant 0 : i32
    %69 = tpu.memref_slice %arg2[%c1_i32, %c0_i32_51, %c0_i32_52, %c0_i32_53] : memref<4x8x8x128xbf16, #tpu.memory_space<vmem>> -> memref<1x8x8x128xbf16, #tpu.memory_space<vmem>>
    %70 = tpu.memref_squeeze %69 : memref<1x8x8x128xbf16, #tpu.memory_space<vmem>> -> memref<8x8x128xbf16, #tpu.memory_space<vmem>>
    %71 = arith.index_cast %c1_i32_45 : i32 to index
    %c0_54 = arith.constant 0 : index
    %c0_55 = arith.constant 0 : index
    %72 = vector.load %70[%71, %c0_54, %c0_55] : memref<8x8x128xbf16, #tpu.memory_space<vmem>>, vector<1x8x128xbf16>
    %73 = vector.shape_cast %72 : vector<1x8x128xbf16> to vector<8x128xbf16>
    %74 = arith.extf %73 : vector<8x128xbf16> to vector<8x128xf32>
    %c0_i32_56 = arith.constant 0 : i32
    %c0_i32_57 = arith.constant 0 : i32
    %c0_i32_58 = arith.constant 0 : i32
    %75 = tpu.memref_slice %arg2[%c2_i32, %c0_i32_56, %c0_i32_57, %c0_i32_58] : memref<4x8x8x128xbf16, #tpu.memory_space<vmem>> -> memref<1x8x8x128xbf16, #tpu.memory_space<vmem>>
    %76 = tpu.memref_squeeze %75 : memref<1x8x8x128xbf16, #tpu.memory_space<vmem>> -> memref<8x8x128xbf16, #tpu.memory_space<vmem>>
    %77 = arith.index_cast %c1_i32_45 : i32 to index
    %c0_59 = arith.constant 0 : index
    %c0_60 = arith.constant 0 : index
    %78 = vector.load %76[%77, %c0_59, %c0_60] : memref<8x8x128xbf16, #tpu.memory_space<vmem>>, vector<1x8x128xbf16>
    %79 = vector.shape_cast %78 : vector<1x8x128xbf16> to vector<8x128xbf16>
    %80 = arith.extf %79 : vector<8x128xbf16> to vector<8x128xf32>
    %c0_i32_61 = arith.constant 0 : i32
    %c0_i32_62 = arith.constant 0 : i32
    %c0_i32_63 = arith.constant 0 : i32
    %81 = tpu.memref_slice %arg2[%c3_i32, %c0_i32_61, %c0_i32_62, %c0_i32_63] : memref<4x8x8x128xbf16, #tpu.memory_space<vmem>> -> memref<1x8x8x128xbf16, #tpu.memory_space<vmem>>
    %82 = tpu.memref_squeeze %81 : memref<1x8x8x128xbf16, #tpu.memory_space<vmem>> -> memref<8x8x128xbf16, #tpu.memory_space<vmem>>
    %83 = arith.index_cast %c1_i32_45 : i32 to index
    %c0_64 = arith.constant 0 : index
    %c0_65 = arith.constant 0 : index
    %84 = vector.load %82[%83, %c0_64, %c0_65] : memref<8x8x128xbf16, #tpu.memory_space<vmem>>, vector<1x8x128xbf16>
    %85 = vector.shape_cast %84 : vector<1x8x128xbf16> to vector<8x128xbf16>
    %86 = arith.extf %85 : vector<8x128xbf16> to vector<8x128xf32>
    %87 = arith.mulf %68, %4 : vector<8x128xf32>
    %88 = arith.mulf %74, %6 : vector<8x128xf32>
    %89 = arith.addf %87, %88 : vector<8x128xf32>
    %90 = arith.mulf %80, %8 : vector<8x128xf32>
    %91 = arith.mulf %86, %10 : vector<8x128xf32>
    %92 = arith.addf %90, %91 : vector<8x128xf32>
    %93 = arith.addf %92, %16 : vector<8x128xf32>
    %94 = arith.mulf %93, %58 : vector<8x128xf32>
    %95 = arith.subf %89, %94 : vector<8x128xf32>
    %96 = arith.mulf %14, %57 : vector<8x128xf32>
    %97 = arith.subf %95, %96 : vector<8x128xf32>
    %98 = arith.mulf %97, %12 : vector<8x128xf32>
    %99 = arith.addf %57, %98 : vector<8x128xf32>
    %100 = arith.addf %58, %99 : vector<8x128xf32>
    %101 = arith.index_cast %c1_i32_45 : i32 to index
    %c0_66 = arith.constant 0 : index
    %c0_67 = arith.constant 0 : index
    %102 = vector.load %arg5[%101, %c0_66, %c0_67] : memref<8x8x128xf32, #tpu.memory_space<vmem>>, vector<1x8x128xf32>
    %103 = vector.shape_cast %102 : vector<1x8x128xf32> to vector<8x128xf32>
    %104 = vector.shape_cast %100 : vector<8x128xf32> to vector<1x8x128xf32>
    tpu.vector_store %arg5[%101, %c0_66, %c0_67], %104 {strides = array<i32>} : memref<8x8x128xf32, #tpu.memory_space<vmem>>, vector<1x8x128xf32>,
    %c2_i32_68 = arith.constant 2 : i32
    %c0_i32_69 = arith.constant 0 : i32
    %c0_i32_70 = arith.constant 0 : i32
    %c0_i32_71 = arith.constant 0 : i32
    %105 = tpu.memref_slice %arg2[%c0_i32_21, %c0_i32_69, %c0_i32_70, %c0_i32_71] : memref<4x8x8x128xbf16, #tpu.memory_space<vmem>> -> memref<1x8x8x128xbf16, #tpu.memory_space<vmem>>
    %106 = tpu.memref_squeeze %105 : memref<1x8x8x128xbf16, #tpu.memory_space<vmem>> -> memref<8x8x128xbf16, #tpu.memory_space<vmem>>
    %107 = arith.index_cast %c2_i32_68 : i32 to index
    %c0_72 = arith.constant 0 : index
    %c0_73 = arith.constant 0 : index
    %108 = vector.load %106[%107, %c0_72, %c0_73] : memref<8x8x128xbf16, #tpu.memory_space<vmem>>, vector<1x8x128xbf16>
    %109 = vector.shape_cast %108 : vector<1x8x128xbf16> to vector<8x128xbf16>
    %110 = arith.extf %109 : vector<8x128xbf16> to vector<8x128xf32>
    %c0_i32_74 = arith.constant 0 : i32
    %c0_i32_75 = arith.constant 0 : i32
    %c0_i32_76 = arith.constant 0 : i32
    %111 = tpu.memref_slice %arg2[%c1_i32, %c0_i32_74, %c0_i32_75, %c0_i32_76] : memref<4x8x8x128xbf16, #tpu.memory_space<vmem>> -> memref<1x8x8x128xbf16, #tpu.memory_space<vmem>>
    %112 = tpu.memref_squeeze %111 : memref<1x8x8x128xbf16, #tpu.memory_space<vmem>> -> memref<8x8x128xbf16, #tpu.memory_space<vmem>>
    %113 = arith.index_cast %c2_i32_68 : i32 to index
    %c0_77 = arith.constant 0 : index
    %c0_78 = arith.constant 0 : index
    %114 = vector.load %112[%113, %c0_77, %c0_78] : memref<8x8x128xbf16, #tpu.memory_space<vmem>>, vector<1x8x128xbf16>
    %115 = vector.shape_cast %114 : vector<1x8x128xbf16> to vector<8x128xbf16>
    %116 = arith.extf %115 : vector<8x128xbf16> to vector<8x128xf32>
    %c0_i32_79 = arith.constant 0 : i32
    %c0_i32_80 = arith.constant 0 : i32
    %c0_i32_81 = arith.constant 0 : i32
    %117 = tpu.memref_slice %arg2[%c2_i32, %c0_i32_79, %c0_i32_80, %c0_i32_81] : memref<4x8x8x128xbf16, #tpu.memory_space<vmem>> -> memref<1x8x8x128xbf16, #tpu.memory_space<vmem>>
    %118 = tpu.memref_squeeze %117 : memref<1x8x8x128xbf16, #tpu.memory_space<vmem>> -> memref<8x8x128xbf16, #tpu.memory_space<vmem>>
    %119 = arith.index_cast %c2_i32_68 : i32 to index
    %c0_82 = arith.constant 0 : index
    %c0_83 = arith.constant 0 : index
    %120 = vector.load %118[%119, %c0_82, %c0_83] : memref<8x8x128xbf16, #tpu.memory_space<vmem>>, vector<1x8x128xbf16>
    %121 = vector.shape_cast %120 : vector<1x8x128xbf16> to vector<8x128xbf16>
    %122 = arith.extf %121 : vector<8x128xbf16> to vector<8x128xf32>
    %c0_i32_84 = arith.constant 0 : i32
    %c0_i32_85 = arith.constant 0 : i32
    %c0_i32_86 = arith.constant 0 : i32
    %123 = tpu.memref_slice %arg2[%c3_i32, %c0_i32_84, %c0_i32_85, %c0_i32_86] : memref<4x8x8x128xbf16, #tpu.memory_space<vmem>> -> memref<1x8x8x128xbf16, #tpu.memory_space<vmem>>
    %124 = tpu.memref_squeeze %123 : memref<1x8x8x128xbf16, #tpu.memory_space<vmem>> -> memref<8x8x128xbf16, #tpu.memory_space<vmem>>
    %125 = arith.index_cast %c2_i32_68 : i32 to index
    %c0_87 = arith.constant 0 : index
    %c0_88 = arith.constant 0 : index
    %126 = vector.load %124[%125, %c0_87, %c0_88] : memref<8x8x128xbf16, #tpu.memory_space<vmem>>, vector<1x8x128xbf16>
    %127 = vector.shape_cast %126 : vector<1x8x128xbf16> to vector<8x128xbf16>
    %128 = arith.extf %127 : vector<8x128xbf16> to vector<8x128xf32>
    %129 = arith.mulf %110, %4 : vector<8x128xf32>
    %130 = arith.mulf %116, %6 : vector<8x128xf32>
    %131 = arith.addf %129, %130 : vector<8x128xf32>
    %132 = arith.mulf %122, %8 : vector<8x128xf32>
    %133 = arith.mulf %128, %10 : vector<8x128xf32>
    %134 = arith.addf %132, %133 : vector<8x128xf32>
    %135 = arith.addf %134, %16 : vector<8x128xf32>
    %136 = arith.mulf %135, %100 : vector<8x128xf32>
    %137 = arith.subf %131, %136 : vector<8x128xf32>
    %138 = arith.mulf %14, %99 : vector<8x128xf32>
    %139 = arith.subf %137, %138 : vector<8x128xf32>
    %140 = arith.mulf %139, %12 : vector<8x128xf32>
    %141 = arith.addf %99, %140 : vector<8x128xf32>
    %142 = arith.addf %100, %141 : vector<8x128xf32>
    %143 = arith.index_cast %c2_i32_68 : i32 to index
    %c0_89 = arith.constant 0 : index
    %c0_90 = arith.constant 0 : index
    %144 = vector.load %arg5[%143, %c0_89, %c0_90] : memref<8x8x128xf32, #tpu.memory_space<vmem>>, vector<1x8x128xf32>
    %145 = vector.shape_cast %144 : vector<1x8x128xf32> to vector<8x128xf32>
    %146 = vector.shape_cast %142 : vector<8x128xf32> to vector<1x8x128xf32>
    tpu.vector_store %arg5[%143, %c0_89, %c0_90], %146 {strides = array<i32>} : memref<8x8x128xf32, #tpu.memory_space<vmem>>, vector<1x8x128xf32>,
    %c3_i32_91 = arith.constant 3 : i32
    %c0_i32_92 = arith.constant 0 : i32
    %c0_i32_93 = arith.constant 0 : i32
    %c0_i32_94 = arith.constant 0 : i32
    %147 = tpu.memref_slice %arg2[%c0_i32_21, %c0_i32_92, %c0_i32_93, %c0_i32_94] : memref<4x8x8x128xbf16, #tpu.memory_space<vmem>> -> memref<1x8x8x128xbf16, #tpu.memory_space<vmem>>
    %148 = tpu.memref_squeeze %147 : memref<1x8x8x128xbf16, #tpu.memory_space<vmem>> -> memref<8x8x128xbf16, #tpu.memory_space<vmem>>
    %149 = arith.index_cast %c3_i32_91 : i32 to index
    %c0_95 = arith.constant 0 : index
    %c0_96 = arith.constant 0 : index
    %150 = vector.load %148[%149, %c0_95, %c0_96] : memref<8x8x128xbf16, #tpu.memory_space<vmem>>, vector<1x8x128xbf16>
    %151 = vector.shape_cast %150 : vector<1x8x128xbf16> to vector<8x128xbf16>
    %152 = arith.extf %151 : vector<8x128xbf16> to vector<8x128xf32>
    %c0_i32_97 = arith.constant 0 : i32
    %c0_i32_98 = arith.constant 0 : i32
    %c0_i32_99 = arith.constant 0 : i32
    %153 = tpu.memref_slice %arg2[%c1_i32, %c0_i32_97, %c0_i32_98, %c0_i32_99] : memref<4x8x8x128xbf16, #tpu.memory_space<vmem>> -> memref<1x8x8x128xbf16, #tpu.memory_space<vmem>>
    %154 = tpu.memref_squeeze %153 : memref<1x8x8x128xbf16, #tpu.memory_space<vmem>> -> memref<8x8x128xbf16, #tpu.memory_space<vmem>>
    %155 = arith.index_cast %c3_i32_91 : i32 to index
    %c0_100 = arith.constant 0 : index
    %c0_101 = arith.constant 0 : index
    %156 = vector.load %154[%155, %c0_100, %c0_101] : memref<8x8x128xbf16, #tpu.memory_space<vmem>>, vector<1x8x128xbf16>
    %157 = vector.shape_cast %156 : vector<1x8x128xbf16> to vector<8x128xbf16>
    %158 = arith.extf %157 : vector<8x128xbf16> to vector<8x128xf32>
    %c0_i32_102 = arith.constant 0 : i32
    %c0_i32_103 = arith.constant 0 : i32
    %c0_i32_104 = arith.constant 0 : i32
    %159 = tpu.memref_slice %arg2[%c2_i32, %c0_i32_102, %c0_i32_103, %c0_i32_104] : memref<4x8x8x128xbf16, #tpu.memory_space<vmem>> -> memref<1x8x8x128xbf16, #tpu.memory_space<vmem>>
    %160 = tpu.memref_squeeze %159 : memref<1x8x8x128xbf16, #tpu.memory_space<vmem>> -> memref<8x8x128xbf16, #tpu.memory_space<vmem>>
    %161 = arith.index_cast %c3_i32_91 : i32 to index
    %c0_105 = arith.constant 0 : index
    %c0_106 = arith.constant 0 : index
    %162 = vector.load %160[%161, %c0_105, %c0_106] : memref<8x8x128xbf16, #tpu.memory_space<vmem>>, vector<1x8x128xbf16>
    %163 = vector.shape_cast %162 : vector<1x8x128xbf16> to vector<8x128xbf16>
    %164 = arith.extf %163 : vector<8x128xbf16> to vector<8x128xf32>
    %c0_i32_107 = arith.constant 0 : i32
    %c0_i32_108 = arith.constant 0 : i32
    %c0_i32_109 = arith.constant 0 : i32
    %165 = tpu.memref_slice %arg2[%c3_i32, %c0_i32_107, %c0_i32_108, %c0_i32_109] : memref<4x8x8x128xbf16, #tpu.memory_space<vmem>> -> memref<1x8x8x128xbf16, #tpu.memory_space<vmem>>
    %166 = tpu.memref_squeeze %165 : memref<1x8x8x128xbf16, #tpu.memory_space<vmem>> -> memref<8x8x128xbf16, #tpu.memory_space<vmem>>
    %167 = arith.index_cast %c3_i32_91 : i32 to index
    %c0_110 = arith.constant 0 : index
    %c0_111 = arith.constant 0 : index
    %168 = vector.load %166[%167, %c0_110, %c0_111] : memref<8x8x128xbf16, #tpu.memory_space<vmem>>, vector<1x8x128xbf16>
    %169 = vector.shape_cast %168 : vector<1x8x128xbf16> to vector<8x128xbf16>
    %170 = arith.extf %169 : vector<8x128xbf16> to vector<8x128xf32>
    %171 = arith.mulf %152, %4 : vector<8x128xf32>
    %172 = arith.mulf %158, %6 : vector<8x128xf32>
    %173 = arith.addf %171, %172 : vector<8x128xf32>
    %174 = arith.mulf %164, %8 : vector<8x128xf32>
    %175 = arith.mulf %170, %10 : vector<8x128xf32>
    %176 = arith.addf %174, %175 : vector<8x128xf32>
    %177 = arith.addf %176, %16 : vector<8x128xf32>
    %178 = arith.mulf %177, %142 : vector<8x128xf32>
    %179 = arith.subf %173, %178 : vector<8x128xf32>
    %180 = arith.mulf %14, %141 : vector<8x128xf32>
    %181 = arith.subf %179, %180 : vector<8x128xf32>
    %182 = arith.mulf %181, %12 : vector<8x128xf32>
    %183 = arith.addf %141, %182 : vector<8x128xf32>
    %184 = arith.addf %142, %183 : vector<8x128xf32>
    %185 = arith.index_cast %c3_i32_91 : i32 to index
    %c0_112 = arith.constant 0 : index
    %c0_113 = arith.constant 0 : index
    %186 = vector.load %arg5[%185, %c0_112, %c0_113] : memref<8x8x128xf32, #tpu.memory_space<vmem>>, vector<1x8x128xf32>
    %187 = vector.shape_cast %186 : vector<1x8x128xf32> to vector<8x128xf32>
    %188 = vector.shape_cast %184 : vector<8x128xf32> to vector<1x8x128xf32>
    tpu.vector_store %arg5[%185, %c0_112, %c0_113], %188 {strides = array<i32>} : memref<8x8x128xf32, #tpu.memory_space<vmem>>, vector<1x8x128xf32>,
    %c4_i32 = arith.constant 4 : i32
    %c0_i32_114 = arith.constant 0 : i32
    %c0_i32_115 = arith.constant 0 : i32
    %c0_i32_116 = arith.constant 0 : i32
    %189 = tpu.memref_slice %arg2[%c0_i32_21, %c0_i32_114, %c0_i32_115, %c0_i32_116] : memref<4x8x8x128xbf16, #tpu.memory_space<vmem>> -> memref<1x8x8x128xbf16, #tpu.memory_space<vmem>>
    %190 = tpu.memref_squeeze %189 : memref<1x8x8x128xbf16, #tpu.memory_space<vmem>> -> memref<8x8x128xbf16, #tpu.memory_space<vmem>>
    %191 = arith.index_cast %c4_i32 : i32 to index
    %c0_117 = arith.constant 0 : index
    %c0_118 = arith.constant 0 : index
    %192 = vector.load %190[%191, %c0_117, %c0_118] : memref<8x8x128xbf16, #tpu.memory_space<vmem>>, vector<1x8x128xbf16>
    %193 = vector.shape_cast %192 : vector<1x8x128xbf16> to vector<8x128xbf16>
    %194 = arith.extf %193 : vector<8x128xbf16> to vector<8x128xf32>
    %c0_i32_119 = arith.constant 0 : i32
    %c0_i32_120 = arith.constant 0 : i32
    %c0_i32_121 = arith.constant 0 : i32
    %195 = tpu.memref_slice %arg2[%c1_i32, %c0_i32_119, %c0_i32_120, %c0_i32_121] : memref<4x8x8x128xbf16, #tpu.memory_space<vmem>> -> memref<1x8x8x128xbf16, #tpu.memory_space<vmem>>
    %196 = tpu.memref_squeeze %195 : memref<1x8x8x128xbf16, #tpu.memory_space<vmem>> -> memref<8x8x128xbf16, #tpu.memory_space<vmem>>
    %197 = arith.index_cast %c4_i32 : i32 to index
    %c0_122 = arith.constant 0 : index
    %c0_123 = arith.constant 0 : index
    %198 = vector.load %196[%197, %c0_122, %c0_123] : memref<8x8x128xbf16, #tpu.memory_space<vmem>>, vector<1x8x128xbf16>
    %199 = vector.shape_cast %198 : vector<1x8x128xbf16> to vector<8x128xbf16>
    %200 = arith.extf %199 : vector<8x128xbf16> to vector<8x128xf32>
    %c0_i32_124 = arith.constant 0 : i32
    %c0_i32_125 = arith.constant 0 : i32
    %c0_i32_126 = arith.constant 0 : i32
    %201 = tpu.memref_slice %arg2[%c2_i32, %c0_i32_124, %c0_i32_125, %c0_i32_126] : memref<4x8x8x128xbf16, #tpu.memory_space<vmem>> -> memref<1x8x8x128xbf16, #tpu.memory_space<vmem>>
    %202 = tpu.memref_squeeze %201 : memref<1x8x8x128xbf16, #tpu.memory_space<vmem>> -> memref<8x8x128xbf16, #tpu.memory_space<vmem>>
    %203 = arith.index_cast %c4_i32 : i32 to index
    %c0_127 = arith.constant 0 : index
    %c0_128 = arith.constant 0 : index
    %204 = vector.load %202[%203, %c0_127, %c0_128] : memref<8x8x128xbf16, #tpu.memory_space<vmem>>, vector<1x8x128xbf16>
    %205 = vector.shape_cast %204 : vector<1x8x128xbf16> to vector<8x128xbf16>
    %206 = arith.extf %205 : vector<8x128xbf16> to vector<8x128xf32>
    %c0_i32_129 = arith.constant 0 : i32
    %c0_i32_130 = arith.constant 0 : i32
    %c0_i32_131 = arith.constant 0 : i32
    %207 = tpu.memref_slice %arg2[%c3_i32, %c0_i32_129, %c0_i32_130, %c0_i32_131] : memref<4x8x8x128xbf16, #tpu.memory_space<vmem>> -> memref<1x8x8x128xbf16, #tpu.memory_space<vmem>>
    %208 = tpu.memref_squeeze %207 : memref<1x8x8x128xbf16, #tpu.memory_space<vmem>> -> memref<8x8x128xbf16, #tpu.memory_space<vmem>>
    %209 = arith.index_cast %c4_i32 : i32 to index
    %c0_132 = arith.constant 0 : index
    %c0_133 = arith.constant 0 : index
    %210 = vector.load %208[%209, %c0_132, %c0_133] : memref<8x8x128xbf16, #tpu.memory_space<vmem>>, vector<1x8x128xbf16>
    %211 = vector.shape_cast %210 : vector<1x8x128xbf16> to vector<8x128xbf16>
    %212 = arith.extf %211 : vector<8x128xbf16> to vector<8x128xf32>
    %213 = arith.mulf %194, %4 : vector<8x128xf32>
    %214 = arith.mulf %200, %6 : vector<8x128xf32>
    %215 = arith.addf %213, %214 : vector<8x128xf32>
    %216 = arith.mulf %206, %8 : vector<8x128xf32>
    %217 = arith.mulf %212, %10 : vector<8x128xf32>
    %218 = arith.addf %216, %217 : vector<8x128xf32>
    %219 = arith.addf %218, %16 : vector<8x128xf32>
    %220 = arith.mulf %219, %184 : vector<8x128xf32>
    %221 = arith.subf %215, %220 : vector<8x128xf32>
    %222 = arith.mulf %14, %183 : vector<8x128xf32>
    %223 = arith.subf %221, %222 : vector<8x128xf32>
    %224 = arith.mulf %223, %12 : vector<8x128xf32>
    %225 = arith.addf %183, %224 : vector<8x128xf32>
    %226 = arith.addf %184, %225 : vector<8x128xf32>
    %227 = arith.index_cast %c4_i32 : i32 to index
    %c0_134 = arith.constant 0 : index
    %c0_135 = arith.constant 0 : index
    %228 = vector.load %arg5[%227, %c0_134, %c0_135] : memref<8x8x128xf32, #tpu.memory_space<vmem>>, vector<1x8x128xf32>
    %229 = vector.shape_cast %228 : vector<1x8x128xf32> to vector<8x128xf32>
    %230 = vector.shape_cast %226 : vector<8x128xf32> to vector<1x8x128xf32>
    tpu.vector_store %arg5[%227, %c0_134, %c0_135], %230 {strides = array<i32>} : memref<8x8x128xf32, #tpu.memory_space<vmem>>, vector<1x8x128xf32>,
    %c5_i32 = arith.constant 5 : i32
    %c0_i32_136 = arith.constant 0 : i32
    %c0_i32_137 = arith.constant 0 : i32
    %c0_i32_138 = arith.constant 0 : i32
    %231 = tpu.memref_slice %arg2[%c0_i32_21, %c0_i32_136, %c0_i32_137, %c0_i32_138] : memref<4x8x8x128xbf16, #tpu.memory_space<vmem>> -> memref<1x8x8x128xbf16, #tpu.memory_space<vmem>>
    %232 = tpu.memref_squeeze %231 : memref<1x8x8x128xbf16, #tpu.memory_space<vmem>> -> memref<8x8x128xbf16, #tpu.memory_space<vmem>>
    %233 = arith.index_cast %c5_i32 : i32 to index
    %c0_139 = arith.constant 0 : index
    %c0_140 = arith.constant 0 : index
    %234 = vector.load %232[%233, %c0_139, %c0_140] : memref<8x8x128xbf16, #tpu.memory_space<vmem>>, vector<1x8x128xbf16>
    %235 = vector.shape_cast %234 : vector<1x8x128xbf16> to vector<8x128xbf16>
    %236 = arith.extf %235 : vector<8x128xbf16> to vector<8x128xf32>
    %c0_i32_141 = arith.constant 0 : i32
    %c0_i32_142 = arith.constant 0 : i32
    %c0_i32_143 = arith.constant 0 : i32
    %237 = tpu.memref_slice %arg2[%c1_i32, %c0_i32_141, %c0_i32_142, %c0_i32_143] : memref<4x8x8x128xbf16, #tpu.memory_space<vmem>> -> memref<1x8x8x128xbf16, #tpu.memory_space<vmem>>
    %238 = tpu.memref_squeeze %237 : memref<1x8x8x128xbf16, #tpu.memory_space<vmem>> -> memref<8x8x128xbf16, #tpu.memory_space<vmem>>
    %239 = arith.index_cast %c5_i32 : i32 to index
    %c0_144 = arith.constant 0 : index
    %c0_145 = arith.constant 0 : index
    %240 = vector.load %238[%239, %c0_144, %c0_145] : memref<8x8x128xbf16, #tpu.memory_space<vmem>>, vector<1x8x128xbf16>
    %241 = vector.shape_cast %240 : vector<1x8x128xbf16> to vector<8x128xbf16>
    %242 = arith.extf %241 : vector<8x128xbf16> to vector<8x128xf32>
    %c0_i32_146 = arith.constant 0 : i32
    %c0_i32_147 = arith.constant 0 : i32
    %c0_i32_148 = arith.constant 0 : i32
    %243 = tpu.memref_slice %arg2[%c2_i32, %c0_i32_146, %c0_i32_147, %c0_i32_148] : memref<4x8x8x128xbf16, #tpu.memory_space<vmem>> -> memref<1x8x8x128xbf16, #tpu.memory_space<vmem>>
    %244 = tpu.memref_squeeze %243 : memref<1x8x8x128xbf16, #tpu.memory_space<vmem>> -> memref<8x8x128xbf16, #tpu.memory_space<vmem>>
    %245 = arith.index_cast %c5_i32 : i32 to index
    %c0_149 = arith.constant 0 : index
    %c0_150 = arith.constant 0 : index
    %246 = vector.load %244[%245, %c0_149, %c0_150] : memref<8x8x128xbf16, #tpu.memory_space<vmem>>, vector<1x8x128xbf16>
    %247 = vector.shape_cast %246 : vector<1x8x128xbf16> to vector<8x128xbf16>
    %248 = arith.extf %247 : vector<8x128xbf16> to vector<8x128xf32>
    %c0_i32_151 = arith.constant 0 : i32
    %c0_i32_152 = arith.constant 0 : i32
    %c0_i32_153 = arith.constant 0 : i32
    %249 = tpu.memref_slice %arg2[%c3_i32, %c0_i32_151, %c0_i32_152, %c0_i32_153] : memref<4x8x8x128xbf16, #tpu.memory_space<vmem>> -> memref<1x8x8x128xbf16, #tpu.memory_space<vmem>>
    %250 = tpu.memref_squeeze %249 : memref<1x8x8x128xbf16, #tpu.memory_space<vmem>> -> memref<8x8x128xbf16, #tpu.memory_space<vmem>>
    %251 = arith.index_cast %c5_i32 : i32 to index
    %c0_154 = arith.constant 0 : index
    %c0_155 = arith.constant 0 : index
    %252 = vector.load %250[%251, %c0_154, %c0_155] : memref<8x8x128xbf16, #tpu.memory_space<vmem>>, vector<1x8x128xbf16>
    %253 = vector.shape_cast %252 : vector<1x8x128xbf16> to vector<8x128xbf16>
    %254 = arith.extf %253 : vector<8x128xbf16> to vector<8x128xf32>
    %255 = arith.mulf %236, %4 : vector<8x128xf32>
    %256 = arith.mulf %242, %6 : vector<8x128xf32>
    %257 = arith.addf %255, %256 : vector<8x128xf32>
    %258 = arith.mulf %248, %8 : vector<8x128xf32>
    %259 = arith.mulf %254, %10 : vector<8x128xf32>
    %260 = arith.addf %258, %259 : vector<8x128xf32>
    %261 = arith.addf %260, %16 : vector<8x128xf32>
    %262 = arith.mulf %261, %226 : vector<8x128xf32>
    %263 = arith.subf %257, %262 : vector<8x128xf32>
    %264 = arith.mulf %14, %225 : vector<8x128xf32>
    %265 = arith.subf %263, %264 : vector<8x128xf32>
    %266 = arith.mulf %265, %12 : vector<8x128xf32>
    %267 = arith.addf %225, %266 : vector<8x128xf32>
    %268 = arith.addf %226, %267 : vector<8x128xf32>
    %269 = arith.index_cast %c5_i32 : i32 to index
    %c0_156 = arith.constant 0 : index
    %c0_157 = arith.constant 0 : index
    %270 = vector.load %arg5[%269, %c0_156, %c0_157] : memref<8x8x128xf32, #tpu.memory_space<vmem>>, vector<1x8x128xf32>
    %271 = vector.shape_cast %270 : vector<1x8x128xf32> to vector<8x128xf32>
    %272 = vector.shape_cast %268 : vector<8x128xf32> to vector<1x8x128xf32>
    tpu.vector_store %arg5[%269, %c0_156, %c0_157], %272 {strides = array<i32>} : memref<8x8x128xf32, #tpu.memory_space<vmem>>, vector<1x8x128xf32>,
    %c6_i32 = arith.constant 6 : i32
    %c0_i32_158 = arith.constant 0 : i32
    %c0_i32_159 = arith.constant 0 : i32
    %c0_i32_160 = arith.constant 0 : i32
    %273 = tpu.memref_slice %arg2[%c0_i32_21, %c0_i32_158, %c0_i32_159, %c0_i32_160] : memref<4x8x8x128xbf16, #tpu.memory_space<vmem>> -> memref<1x8x8x128xbf16, #tpu.memory_space<vmem>>
    %274 = tpu.memref_squeeze %273 : memref<1x8x8x128xbf16, #tpu.memory_space<vmem>> -> memref<8x8x128xbf16, #tpu.memory_space<vmem>>
    %275 = arith.index_cast %c6_i32 : i32 to index
    %c0_161 = arith.constant 0 : index
    %c0_162 = arith.constant 0 : index
    %276 = vector.load %274[%275, %c0_161, %c0_162] : memref<8x8x128xbf16, #tpu.memory_space<vmem>>, vector<1x8x128xbf16>
    %277 = vector.shape_cast %276 : vector<1x8x128xbf16> to vector<8x128xbf16>
    %278 = arith.extf %277 : vector<8x128xbf16> to vector<8x128xf32>
    %c0_i32_163 = arith.constant 0 : i32
    %c0_i32_164 = arith.constant 0 : i32
    %c0_i32_165 = arith.constant 0 : i32
    %279 = tpu.memref_slice %arg2[%c1_i32, %c0_i32_163, %c0_i32_164, %c0_i32_165] : memref<4x8x8x128xbf16, #tpu.memory_space<vmem>> -> memref<1x8x8x128xbf16, #tpu.memory_space<vmem>>
    %280 = tpu.memref_squeeze %279 : memref<1x8x8x128xbf16, #tpu.memory_space<vmem>> -> memref<8x8x128xbf16, #tpu.memory_space<vmem>>
    %281 = arith.index_cast %c6_i32 : i32 to index
    %c0_166 = arith.constant 0 : index
    %c0_167 = arith.constant 0 : index
    %282 = vector.load %280[%281, %c0_166, %c0_167] : memref<8x8x128xbf16, #tpu.memory_space<vmem>>, vector<1x8x128xbf16>
    %283 = vector.shape_cast %282 : vector<1x8x128xbf16> to vector<8x128xbf16>
    %284 = arith.extf %283 : vector<8x128xbf16> to vector<8x128xf32>
    %c0_i32_168 = arith.constant 0 : i32
    %c0_i32_169 = arith.constant 0 : i32
    %c0_i32_170 = arith.constant 0 : i32
    %285 = tpu.memref_slice %arg2[%c2_i32, %c0_i32_168, %c0_i32_169, %c0_i32_170] : memref<4x8x8x128xbf16, #tpu.memory_space<vmem>> -> memref<1x8x8x128xbf16, #tpu.memory_space<vmem>>
    %286 = tpu.memref_squeeze %285 : memref<1x8x8x128xbf16, #tpu.memory_space<vmem>> -> memref<8x8x128xbf16, #tpu.memory_space<vmem>>
    %287 = arith.index_cast %c6_i32 : i32 to index
    %c0_171 = arith.constant 0 : index
    %c0_172 = arith.constant 0 : index
    %288 = vector.load %286[%287, %c0_171, %c0_172] : memref<8x8x128xbf16, #tpu.memory_space<vmem>>, vector<1x8x128xbf16>
    %289 = vector.shape_cast %288 : vector<1x8x128xbf16> to vector<8x128xbf16>
    %290 = arith.extf %289 : vector<8x128xbf16> to vector<8x128xf32>
    %c0_i32_173 = arith.constant 0 : i32
    %c0_i32_174 = arith.constant 0 : i32
    %c0_i32_175 = arith.constant 0 : i32
    %291 = tpu.memref_slice %arg2[%c3_i32, %c0_i32_173, %c0_i32_174, %c0_i32_175] : memref<4x8x8x128xbf16, #tpu.memory_space<vmem>> -> memref<1x8x8x128xbf16, #tpu.memory_space<vmem>>
    %292 = tpu.memref_squeeze %291 : memref<1x8x8x128xbf16, #tpu.memory_space<vmem>> -> memref<8x8x128xbf16, #tpu.memory_space<vmem>>
    %293 = arith.index_cast %c6_i32 : i32 to index
    %c0_176 = arith.constant 0 : index
    %c0_177 = arith.constant 0 : index
    %294 = vector.load %292[%293, %c0_176, %c0_177] : memref<8x8x128xbf16, #tpu.memory_space<vmem>>, vector<1x8x128xbf16>
    %295 = vector.shape_cast %294 : vector<1x8x128xbf16> to vector<8x128xbf16>
    %296 = arith.extf %295 : vector<8x128xbf16> to vector<8x128xf32>
    %297 = arith.mulf %278, %4 : vector<8x128xf32>
    %298 = arith.mulf %284, %6 : vector<8x128xf32>
    %299 = arith.addf %297, %298 : vector<8x128xf32>
    %300 = arith.mulf %290, %8 : vector<8x128xf32>
    %301 = arith.mulf %296, %10 : vector<8x128xf32>
    %302 = arith.addf %300, %301 : vector<8x128xf32>
    %303 = arith.addf %302, %16 : vector<8x128xf32>
    %304 = arith.mulf %303, %268 : vector<8x128xf32>
    %305 = arith.subf %299, %304 : vector<8x128xf32>
    %306 = arith.mulf %14, %267 : vector<8x128xf32>
    %307 = arith.subf %305, %306 : vector<8x128xf32>
    %308 = arith.mulf %307, %12 : vector<8x128xf32>
    %309 = arith.addf %267, %308 : vector<8x128xf32>
    %310 = arith.addf %268, %309 : vector<8x128xf32>
    %311 = arith.index_cast %c6_i32 : i32 to index
    %c0_178 = arith.constant 0 : index
    %c0_179 = arith.constant 0 : index
    %312 = vector.load %arg5[%311, %c0_178, %c0_179] : memref<8x8x128xf32, #tpu.memory_space<vmem>>, vector<1x8x128xf32>
    %313 = vector.shape_cast %312 : vector<1x8x128xf32> to vector<8x128xf32>
    %314 = vector.shape_cast %310 : vector<8x128xf32> to vector<1x8x128xf32>
    tpu.vector_store %arg5[%311, %c0_178, %c0_179], %314 {strides = array<i32>} : memref<8x8x128xf32, #tpu.memory_space<vmem>>, vector<1x8x128xf32>,
    %c7_i32 = arith.constant 7 : i32
    %c0_i32_180 = arith.constant 0 : i32
    %c0_i32_181 = arith.constant 0 : i32
    %c0_i32_182 = arith.constant 0 : i32
    %315 = tpu.memref_slice %arg2[%c0_i32_21, %c0_i32_180, %c0_i32_181, %c0_i32_182] : memref<4x8x8x128xbf16, #tpu.memory_space<vmem>> -> memref<1x8x8x128xbf16, #tpu.memory_space<vmem>>
    %316 = tpu.memref_squeeze %315 : memref<1x8x8x128xbf16, #tpu.memory_space<vmem>> -> memref<8x8x128xbf16, #tpu.memory_space<vmem>>
    %317 = arith.index_cast %c7_i32 : i32 to index
    %c0_183 = arith.constant 0 : index
    %c0_184 = arith.constant 0 : index
    %318 = vector.load %316[%317, %c0_183, %c0_184] : memref<8x8x128xbf16, #tpu.memory_space<vmem>>, vector<1x8x128xbf16>
    %319 = vector.shape_cast %318 : vector<1x8x128xbf16> to vector<8x128xbf16>
    %320 = arith.extf %319 : vector<8x128xbf16> to vector<8x128xf32>
    %c0_i32_185 = arith.constant 0 : i32
    %c0_i32_186 = arith.constant 0 : i32
    %c0_i32_187 = arith.constant 0 : i32
    %321 = tpu.memref_slice %arg2[%c1_i32, %c0_i32_185, %c0_i32_186, %c0_i32_187] : memref<4x8x8x128xbf16, #tpu.memory_space<vmem>> -> memref<1x8x8x128xbf16, #tpu.memory_space<vmem>>
    %322 = tpu.memref_squeeze %321 : memref<1x8x8x128xbf16, #tpu.memory_space<vmem>> -> memref<8x8x128xbf16, #tpu.memory_space<vmem>>
    %323 = arith.index_cast %c7_i32 : i32 to index
    %c0_188 = arith.constant 0 : index
    %c0_189 = arith.constant 0 : index
    %324 = vector.load %322[%323, %c0_188, %c0_189] : memref<8x8x128xbf16, #tpu.memory_space<vmem>>, vector<1x8x128xbf16>
    %325 = vector.shape_cast %324 : vector<1x8x128xbf16> to vector<8x128xbf16>
    %326 = arith.extf %325 : vector<8x128xbf16> to vector<8x128xf32>
    %c0_i32_190 = arith.constant 0 : i32
    %c0_i32_191 = arith.constant 0 : i32
    %c0_i32_192 = arith.constant 0 : i32
    %327 = tpu.memref_slice %arg2[%c2_i32, %c0_i32_190, %c0_i32_191, %c0_i32_192] : memref<4x8x8x128xbf16, #tpu.memory_space<vmem>> -> memref<1x8x8x128xbf16, #tpu.memory_space<vmem>>
    %328 = tpu.memref_squeeze %327 : memref<1x8x8x128xbf16, #tpu.memory_space<vmem>> -> memref<8x8x128xbf16, #tpu.memory_space<vmem>>
    %329 = arith.index_cast %c7_i32 : i32 to index
    %c0_193 = arith.constant 0 : index
    %c0_194 = arith.constant 0 : index
    %330 = vector.load %328[%329, %c0_193, %c0_194] : memref<8x8x128xbf16, #tpu.memory_space<vmem>>, vector<1x8x128xbf16>
    %331 = vector.shape_cast %330 : vector<1x8x128xbf16> to vector<8x128xbf16>
    %332 = arith.extf %331 : vector<8x128xbf16> to vector<8x128xf32>
    %c0_i32_195 = arith.constant 0 : i32
    %c0_i32_196 = arith.constant 0 : i32
    %c0_i32_197 = arith.constant 0 : i32
    %333 = tpu.memref_slice %arg2[%c3_i32, %c0_i32_195, %c0_i32_196, %c0_i32_197] : memref<4x8x8x128xbf16, #tpu.memory_space<vmem>> -> memref<1x8x8x128xbf16, #tpu.memory_space<vmem>>
    %334 = tpu.memref_squeeze %333 : memref<1x8x8x128xbf16, #tpu.memory_space<vmem>> -> memref<8x8x128xbf16, #tpu.memory_space<vmem>>
    %335 = arith.index_cast %c7_i32 : i32 to index
    %c0_198 = arith.constant 0 : index
    %c0_199 = arith.constant 0 : index
    %336 = vector.load %334[%335, %c0_198, %c0_199] : memref<8x8x128xbf16, #tpu.memory_space<vmem>>, vector<1x8x128xbf16>
    %337 = vector.shape_cast %336 : vector<1x8x128xbf16> to vector<8x128xbf16>
    %338 = arith.extf %337 : vector<8x128xbf16> to vector<8x128xf32>
    %339 = arith.mulf %320, %4 : vector<8x128xf32>
    %340 = arith.mulf %326, %6 : vector<8x128xf32>
    %341 = arith.addf %339, %340 : vector<8x128xf32>
    %342 = arith.mulf %332, %8 : vector<8x128xf32>
    %343 = arith.mulf %338, %10 : vector<8x128xf32>
    %344 = arith.addf %342, %343 : vector<8x128xf32>
    %345 = arith.addf %344, %16 : vector<8x128xf32>
    %346 = arith.mulf %345, %310 : vector<8x128xf32>
    %347 = arith.subf %341, %346 : vector<8x128xf32>
    %348 = arith.mulf %14, %309 : vector<8x128xf32>
    %349 = arith.subf %347, %348 : vector<8x128xf32>
    %350 = arith.mulf %349, %12 : vector<8x128xf32>
    %351 = arith.addf %309, %350 : vector<8x128xf32>
    %352 = arith.addf %310, %351 : vector<8x128xf32>
    %353 = arith.index_cast %c7_i32 : i32 to index
    %c0_200 = arith.constant 0 : index
    %c0_201 = arith.constant 0 : index
    %354 = vector.load %arg5[%353, %c0_200, %c0_201] : memref<8x8x128xf32, #tpu.memory_space<vmem>>, vector<1x8x128xf32>
    %355 = vector.shape_cast %354 : vector<1x8x128xf32> to vector<8x128xf32>
    %356 = vector.shape_cast %352 : vector<8x128xf32> to vector<1x8x128xf32>
    tpu.vector_store %arg5[%353, %c0_200, %c0_201], %356 {strides = array<i32>} : memref<8x8x128xf32, #tpu.memory_space<vmem>>, vector<1x8x128xf32>,
    %c8_i32 = arith.constant 8 : i32
    %c0_202 = arith.constant 0 : index
    %c0_203 = arith.constant 0 : index
    %c0_204 = arith.constant 0 : index
    %357 = vector.load %arg8[%c0_202, %c0_203, %c0_204] : memref<2x8x128xf32, #tpu.memory_space<vmem>>, vector<1x8x128xf32>
    %358 = vector.shape_cast %357 : vector<1x8x128xf32> to vector<8x128xf32>
    %359 = vector.shape_cast %352 : vector<8x128xf32> to vector<1x8x128xf32>
    tpu.vector_store %arg8[%c0_202, %c0_203, %c0_204], %359 {strides = array<i32>} : memref<2x8x128xf32, #tpu.memory_space<vmem>>, vector<1x8x128xf32>,
    %c1_205 = arith.constant 1 : index
    %c0_206 = arith.constant 0 : index
    %c0_207 = arith.constant 0 : index
    %360 = vector.load %arg8[%c1_205, %c0_206, %c0_207] : memref<2x8x128xf32, #tpu.memory_space<vmem>>, vector<1x8x128xf32>
    %361 = vector.shape_cast %360 : vector<1x8x128xf32> to vector<8x128xf32>
    %362 = vector.shape_cast %351 : vector<8x128xf32> to vector<1x8x128xf32>
    tpu.vector_store %arg8[%c1_205, %c0_206, %c0_207], %362 {strides = array<i32>} : memref<2x8x128xf32, #tpu.memory_space<vmem>>, vector<1x8x128xf32>,
    %c0_i32_208 = arith.constant 0 : i32
    %363 = arith.cmpi eq, %arg1, %c0_i32_208 : i32
    %364 = arith.extui %363 : i1 to i32
    %c0_i32_209 = arith.constant 0 : i32
    %365 = arith.cmpi ne, %364, %c0_i32_209 : i32
    scf.if %365 {
      %cst = arith.constant 6.000000e+01 : f32
      %366 = vector.broadcast %cst : f32 to vector<8x128xf32>
      %367 = arith.mulf %351, %366 : vector<8x128xf32>
      %c0_210 = arith.constant 0 : index
      %c0_211 = arith.constant 0 : index
      %c0_212 = arith.constant 0 : index
      %368 = vector.load %arg6[%c0_210, %c0_211, %c0_212] : memref<2x8x128xf32, #tpu.memory_space<vmem>>, vector<1x8x128xf32>
      %369 = vector.shape_cast %368 : vector<1x8x128xf32> to vector<8x128xf32>
      %370 = vector.shape_cast %352 : vector<8x128xf32> to vector<1x8x128xf32>
      tpu.vector_store %arg6[%c0_210, %c0_211, %c0_212], %370 {strides = array<i32>} : memref<2x8x128xf32, #tpu.memory_space<vmem>>, vector<1x8x128xf32>,
      %c1_213 = arith.constant 1 : index
      %c0_214 = arith.constant 0 : index
      %c0_215 = arith.constant 0 : index
      %371 = vector.load %arg6[%c1_213, %c0_214, %c0_215] : memref<2x8x128xf32, #tpu.memory_space<vmem>>, vector<1x8x128xf32>
      %372 = vector.shape_cast %371 : vector<1x8x128xf32> to vector<8x128xf32>
      %373 = vector.shape_cast %367 : vector<8x128xf32> to vector<1x8x128xf32>
      tpu.vector_store %arg6[%c1_213, %c0_214, %c0_215], %373 {strides = array<i32>} : memref<2x8x128xf32, #tpu.memory_space<vmem>>, vector<1x8x128xf32>,
      %374 = arith.mulf %352, %4 : vector<8x128xf32>
      %c0_216 = arith.constant 0 : index
      %c0_217 = arith.constant 0 : index
      %c0_218 = arith.constant 0 : index
      %375 = vector.load %arg7[%c0_216, %c0_217, %c0_218] : memref<4x8x128xf32, #tpu.memory_space<vmem>>, vector<1x8x128xf32>
      %376 = vector.shape_cast %375 : vector<1x8x128xf32> to vector<8x128xf32>
      %377 = vector.shape_cast %374 : vector<8x128xf32> to vector<1x8x128xf32>
      tpu.vector_store %arg7[%c0_216, %c0_217, %c0_218], %377 {strides = array<i32>} : memref<4x8x128xf32, #tpu.memory_space<vmem>>, vector<1x8x128xf32>,
      %378 = arith.mulf %352, %6 : vector<8x128xf32>
      %c1_219 = arith.constant 1 : index
      %c0_220 = arith.constant 0 : index
      %c0_221 = arith.constant 0 : index
      %379 = vector.load %arg7[%c1_219, %c0_220, %c0_221] : memref<4x8x128xf32, #tpu.memory_space<vmem>>, vector<1x8x128xf32>
      %380 = vector.shape_cast %379 : vector<1x8x128xf32> to vector<8x128xf32>
      %381 = vector.shape_cast %378 : vector<8x128xf32> to vector<1x8x128xf32>
      tpu.vector_store %arg7[%c1_219, %c0_220, %c0_221], %381 {strides = array<i32>} : memref<4x8x128xf32, #tpu.memory_space<vmem>>, vector<1x8x128xf32>,
      %382 = arith.mulf %367, %4 : vector<8x128xf32>
      %c2_222 = arith.constant 2 : index
      %c0_223 = arith.constant 0 : index
      %c0_224 = arith.constant 0 : index
      %383 = vector.load %arg7[%c2_222, %c0_223, %c0_224] : memref<4x8x128xf32, #tpu.memory_space<vmem>>, vector<1x8x128xf32>
      %384 = vector.shape_cast %383 : vector<1x8x128xf32> to vector<8x128xf32>
      %385 = vector.shape_cast %382 : vector<8x128xf32> to vector<1x8x128xf32>
      tpu.vector_store %arg7[%c2_222, %c0_223, %c0_224], %385 {strides = array<i32>} : memref<4x8x128xf32, #tpu.memory_space<vmem>>, vector<1x8x128xf32>,
      %386 = arith.mulf %367, %6 : vector<8x128xf32>
      %c3_225 = arith.constant 3 : index
      %c0_226 = arith.constant 0 : index
      %c0_227 = arith.constant 0 : index
      %387 = vector.load %arg7[%c3_225, %c0_226, %c0_227] : memref<4x8x128xf32, #tpu.memory_space<vmem>>, vector<1x8x128xf32>
      %388 = vector.shape_cast %387 : vector<1x8x128xf32> to vector<8x128xf32>
      %389 = vector.shape_cast %386 : vector<8x128xf32> to vector<1x8x128xf32>
      tpu.vector_store %arg7[%c3_225, %c0_226, %c0_227], %389 {strides = array<i32>} : memref<4x8x128xf32, #tpu.memory_space<vmem>>, vector<1x8x128xf32>,
    } else {
    }
    return
  }
  func.func @transform_0(%arg0: i32, %arg1: i32) -> (i32, i32, i32, i32) {
    %c0_i32 = arith.constant 0 : i32
    %c0_i32_0 = arith.constant 0 : i32
    %c0_i32_1 = arith.constant 0 : i32
    return %c0_i32, %arg1, %arg0, %c0_i32_0 : i32, i32, i32, i32
  }
  func.func @transform_1(%arg0: i32, %arg1: i32) -> (i32, i32, i32) {
    %c0_i32 = arith.constant 0 : i32
    %c0_i32_0 = arith.constant 0 : i32
    %c0_i32_1 = arith.constant 0 : i32
    return %c0_i32, %arg0, %c0_i32_0 : i32, i32, i32
  }
  func.func @transform_2(%arg0: i32, %arg1: i32) -> (i32, i32, i32) {
    %c0_i32 = arith.constant 0 : i32
    %c0_i32_0 = arith.constant 0 : i32
    %c0_i32_1 = arith.constant 0 : i32
    return %c0_i32, %arg0, %c0_i32_0 : i32, i32, i32
  }
  func.func @transform_3(%arg0: i32, %arg1: i32) -> (i32, i32, i32) {
    %c0_i32 = arith.constant 0 : i32
    %c0_i32_0 = arith.constant 0 : i32
    return %arg1, %arg0, %c0_i32 : i32, i32, i32
  }
  func.func @transform_4(%arg0: i32, %arg1: i32) -> (i32, i32, i32) {
    %c0_i32 = arith.constant 0 : i32
    %c0_i32_0 = arith.constant 0 : i32
    %c0_i32_1 = arith.constant 0 : i32
    return %c0_i32, %arg0, %c0_i32_0 : i32, i32, i32
  }
  func.func @transform_5(%arg0: i32, %arg1: i32) -> (i32, i32, i32) {
    %c0_i32 = arith.constant 0 : i32
    %c0_i32_0 = arith.constant 0 : i32
    %c0_i32_1 = arith.constant 0 : i32
    return %c0_i32, %arg0, %c0_i32_0 : i32, i32, i32
  }
}

</mosaic_0001>

<llo_original>
// kernel: phys_joint_forward.1
$region0: #{phys_joint_forward.1}
  #allocation0 [shape = 'u32[]', space=smem, size = 0x4, offset = 0x4, fixed_abs, tag = 'smem constant byte address 0x4 - core index']
  #allocation1 [shape = 'u32[144,128]{1,0:T(1,128)}', space=vmem, size = 0x12000, scoped, tag = 'internal scratch']
  #allocation2 [shape = 'f32[2,8,128]{2,1,0:T(8,128)}', space=vmem, size = 0x2000, scoped, tag = 'scratch operand']
  %s0 = inlined_call_operand.vmem [shape: bf16[4,8,8,128], index: 0, kind: input, shape index: {}]
  %s1 = inlined_call_operand.vmem [shape: f32[2,8,128], index: 1, kind: input, shape index: {}]
  %s2 = inlined_call_operand.vmem [shape: f32[7,8,128], index: 2, kind: input, shape index: {}]
  %s3 = inlined_call_operand.vmem [shape: f32[8,8,128], index: 3, kind: output, shape index: {0}]
  %s4 = inlined_call_operand.vmem [shape: f32[2,8,128], index: 4, kind: output, shape index: {1}]
  %s5 = inlined_call_operand.vmem [shape: f32[4,8,128], index: 5, kind: output, shape index: {2}]
  %6 = xla_tuple %s3, %s4, %s5
  %s7 = sld [smem:[#allocation0]]
  $region46: #{phys_joint_forward.1} parent=0
    _
  %s9 = ssub.s32 1, %s7
  %s10 = scalar_select 0, %s9, %s7
  // Predicated region
  $region2: #{phys_joint_forward.1} parent=0 // pred_check
    _
  $region3: #{phys_joint_forward.1} parent=0 // pred_check_branch
    %12 = sbr.rel (0) target = $region5
  $region4: #{phys_joint_forward.1} parent=0 // pred_region
    _
  $region5: #{phys_joint_forward.1} parent=0 // pred_fallthru
    _
  // Predicated region
  $region6: #{phys_joint_forward.1} parent=0 // pred_check
    _
  $region7: #{phys_joint_forward.1} parent=0 // pred_check_branch
    %14 = sbr.rel (0) target = $region9
  $region8: #{phys_joint_forward.1} parent=0 // pred_region
    _
  $region9: #{phys_joint_forward.1} parent=0 // pred_fallthru
    _
  // Predicated region
  $region10: #{phys_joint_forward.1} parent=0 // pred_check
    _
  $region11: #{phys_joint_forward.1} parent=0 // pred_check_branch
    %16 = sbr.rel (0) target = $region13
  $region12: #{phys_joint_forward.1} parent=0 // pred_region
    _
  $region13: #{phys_joint_forward.1} parent=0 // pred_fallthru
    _
  %p17 = scmp.eq.s32.totalorder 0, 0
  // Predicated region
  $region14: #{phys_joint_forward.1} parent=0 // pred_check
    %p18 = pneg %p17
  $region15: #{phys_joint_forward.1} parent=0 // pred_check_branch
    %20 = sbr.rel (%p18) target = $region17
  $region16: #{phys_joint_forward.1} parent=0 // pred_region
    %v21 = vld [vmem:[%s1] sm:$0xff]
    %v22 = vld [vmem:[%s1 + $0x8] sm:$0xff]
    %23 = vst [vmem:[#allocation2] sm:$0xff] %v21
    %24 = vst [vmem:[#allocation2 + $0x8] sm:$0xff] %v22
  $region17: #{phys_joint_forward.1} parent=0 // pred_fallthru
    _
  %v25 = vld [vmem:[%s2] sm:$0xff]
  %s26 = scalar_lea.vmem %s2, 8
  %v27 = vld [vmem:[%s26] sm:$0xff]
  %s28 = scalar_lea.vmem %s2, 16
  %v29 = vld [vmem:[%s28] sm:$0xff]
  %s30 = scalar_lea.vmem %s2, 24
  %v31 = vld [vmem:[%s30] sm:$0xff]
  %s32 = scalar_lea.vmem %s2, 32
  %v33 = vld [vmem:[%s32] sm:$0xff]
  %s34 = scalar_lea.vmem %s2, 40
  %v35 = vld [vmem:[%s34] sm:$0xff]
  %s36 = scalar_lea.vmem %s2, 48
  %v37 = vld [vmem:[%s36] sm:$0xff]
  %v38 = vld [vmem:[#allocation2] sm:$0xff]
  %s39 = scalar_lea.vmem [#allocation2], 8
  %v40 = vld [vmem:[%s39] sm:$0xff]
  %v41 = vld [vmem:[%s0] sm:$0xf]
  %v42 = vunpack.c.l.bf16 %v41
  %s43 = scalar_lea.vmem %s0, 32
  %v44 = vld [vmem:[%s43] sm:$0xf]
  %v45 = vunpack.c.l.bf16 %v44
  %s46 = scalar_lea.vmem %s0, 64
  %v47 = vld [vmem:[%s46] sm:$0xf]
  %v48 = vunpack.c.l.bf16 %v47
  %s49 = scalar_lea.vmem %s0, 96
  %v50 = vld [vmem:[%s49] sm:$0xf]
  %v51 = vunpack.c.l.bf16 %v50
  %v52 = vmul.f32 %v42, %v25
  %v53 = vmul.f32 %v45, %v27
  %v54 = vadd.f32 %v52, %v53
  %v55 = vmul.f32 %v48, %v29
  %v56 = vmul.f32 %v51, %v31
  %v57 = vadd.f32 %v55, %v56
  %v58 = vadd.f32 %v57, %v37
  %v59 = vmul.f32 %v58, %v38
  %v60 = vsub.f32 %v54, %v59
  %v61 = vmul.f32 %v35, %v40
  %v62 = vsub.f32 %v60, %v61
  %v63 = vmul.f32 %v62, %v33
  %v64 = vadd.f32 %v40, %v63
  %v65 = vadd.f32 %v38, %v64
  %66 = vst [vmem:[%s3] sm:$0xff] %v65
  %s67 = scalar_lea.vmem %s0, 4
  %v68 = vld [vmem:[%s67] sm:$0xf]
  %v69 = vunpack.c.l.bf16 %v68
  %s70 = scalar_lea.vmem %s43, 4
  %v71 = vld [vmem:[%s70] sm:$0xf]
  %v72 = vunpack.c.l.bf16 %v71
  %s73 = scalar_lea.vmem %s46, 4
  %v74 = vld [vmem:[%s73] sm:$0xf]
  %v75 = vunpack.c.l.bf16 %v74
  %s76 = scalar_lea.vmem %s49, 4
  %v77 = vld [vmem:[%s76] sm:$0xf]
  %v78 = vunpack.c.l.bf16 %v77
  %v79 = vmul.f32 %v69, %v25
  %v80 = vmul.f32 %v72, %v27
  %v81 = vadd.f32 %v79, %v80
  %v82 = vmul.f32 %v75, %v29
  %v83 = vmul.f32 %v78, %v31
  %v84 = vadd.f32 %v82, %v83
  %v85 = vadd.f32 %v84, %v37
  %v86 = vmul.f32 %v85, %v65
  %v87 = vsub.f32 %v81, %v86
  %v88 = vmul.f32 %v35, %v64
  %v89 = vsub.f32 %v87, %v88
  %v90 = vmul.f32 %v89, %v33
  %v91 = vadd.f32 %v64, %v90
  %v92 = vadd.f32 %v65, %v91
  %s93 = scalar_lea.vmem %s3, 8
  %94 = vst [vmem:[%s93] sm:$0xff] %v92
  %s95 = scalar_lea.vmem %s0, 8
  %v96 = vld [vmem:[%s95] sm:$0xf]
  %v97 = vunpack.c.l.bf16 %v96
  %s98 = scalar_lea.vmem %s43, 8
  %v99 = vld [vmem:[%s98] sm:$0xf]
  %v100 = vunpack.c.l.bf16 %v99
  %s101 = scalar_lea.vmem %s46, 8
  %v102 = vld [vmem:[%s101] sm:$0xf]
  %v103 = vunpack.c.l.bf16 %v102
  %s104 = scalar_lea.vmem %s49, 8
  %v105 = vld [vmem:[%s104] sm:$0xf]
  %v106 = vunpack.c.l.bf16 %v105
  %v107 = vmul.f32 %v97, %v25
  %v108 = vmul.f32 %v100, %v27
  %v109 = vadd.f32 %v107, %v108
  %v110 = vmul.f32 %v103, %v29
  %v111 = vmul.f32 %v106, %v31
  %v112 = vadd.f32 %v110, %v111
  %v113 = vadd.f32 %v112, %v37
  %v114 = vmul.f32 %v113, %v92
  %v115 = vsub.f32 %v109, %v114
  %v116 = vmul.f32 %v35, %v91
  %v117 = vsub.f32 %v115, %v116
  %v118 = vmul.f32 %v117, %v33
  %v119 = vadd.f32 %v91, %v118
  %v120 = vadd.f32 %v92, %v119
  %s121 = scalar_lea.vmem %s3, 16
  %122 = vst [vmem:[%s121] sm:$0xff] %v120
  %s123 = scalar_lea.vmem %s0, 12
  %v124 = vld [vmem:[%s123] sm:$0xf]
  %v125 = vunpack.c.l.bf16 %v124
  %s126 = scalar_lea.vmem %s43, 12
  %v127 = vld [vmem:[%s126] sm:$0xf]
  %v128 = vunpack.c.l.bf16 %v127
  %s129 = scalar_lea.vmem %s46, 12
  %v130 = vld [vmem:[%s129] sm:$0xf]
  %v131 = vunpack.c.l.bf16 %v130
  %s132 = scalar_lea.vmem %s49, 12
  %v133 = vld [vmem:[%s132] sm:$0xf]
  %v134 = vunpack.c.l.bf16 %v133
  %v135 = vmul.f32 %v125, %v25
  %v136 = vmul.f32 %v128, %v27
  %v137 = vadd.f32 %v135, %v136
  %v138 = vmul.f32 %v131, %v29
  %v139 = vmul.f32 %v134, %v31
  %v140 = vadd.f32 %v138, %v139
  %v141 = vadd.f32 %v140, %v37
  %v142 = vmul.f32 %v141, %v120
  %v143 = vsub.f32 %v137, %v142
  %v144 = vmul.f32 %v35, %v119
  %v145 = vsub.f32 %v143, %v144
  %v146 = vmul.f32 %v145, %v33
  %v147 = vadd.f32 %v119, %v146
  %v148 = vadd.f32 %v120, %v147
  %s149 = scalar_lea.vmem %s3, 24
  %150 = vst [vmem:[%s149] sm:$0xff] %v148
  %s151 = scalar_lea.vmem %s0, 16
  %v152 = vld [vmem:[%s151] sm:$0xf]
  %v153 = vunpack.c.l.bf16 %v152
  %s154 = scalar_lea.vmem %s43, 16
  %v155 = vld [vmem:[%s154] sm:$0xf]
  %v156 = vunpack.c.l.bf16 %v155
  %s157 = scalar_lea.vmem %s46, 16
  %v158 = vld [vmem:[%s157] sm:$0xf]
  %v159 = vunpack.c.l.bf16 %v158
  %s160 = scalar_lea.vmem %s49, 16
  %v161 = vld [vmem:[%s160] sm:$0xf]
  %v162 = vunpack.c.l.bf16 %v161
  %v163 = vmul.f32 %v153, %v25
  %v164 = vmul.f32 %v156, %v27
  %v165 = vadd.f32 %v163, %v164
  %v166 = vmul.f32 %v159, %v29
  %v167 = vmul.f32 %v162, %v31
  %v168 = vadd.f32 %v166, %v167
  %v169 = vadd.f32 %v168, %v37
  %v170 = vmul.f32 %v169, %v148
  %v171 = vsub.f32 %v165, %v170
  %v172 = vmul.f32 %v35, %v147
  %v173 = vsub.f32 %v171, %v172
  %v174 = vmul.f32 %v173, %v33
  %v175 = vadd.f32 %v147, %v174
  %v176 = vadd.f32 %v148, %v175
  %s177 = scalar_lea.vmem %s3, 32
  %178 = vst [vmem:[%s177] sm:$0xff] %v176
  %s179 = scalar_lea.vmem %s0, 20
  %v180 = vld [vmem:[%s179] sm:$0xf]
  %v181 = vunpack.c.l.bf16 %v180
  %s182 = scalar_lea.vmem %s43, 20
  %v183 = vld [vmem:[%s182] sm:$0xf]
  %v184 = vunpack.c.l.bf16 %v183
  %s185 = scalar_lea.vmem %s46, 20
  %v186 = vld [vmem:[%s185] sm:$0xf]
  %v187 = vunpack.c.l.bf16 %v186
  %s188 = scalar_lea.vmem %s49, 20
  %v189 = vld [vmem:[%s188] sm:$0xf]
  %v190 = vunpack.c.l.bf16 %v189
  %v191 = vmul.f32 %v181, %v25
  %v192 = vmul.f32 %v184, %v27
  %v193 = vadd.f32 %v191, %v192
  %v194 = vmul.f32 %v187, %v29
  %v195 = vmul.f32 %v190, %v31
  %v196 = vadd.f32 %v194, %v195
  %v197 = vadd.f32 %v196, %v37
  %v198 = vmul.f32 %v197, %v176
  %v199 = vsub.f32 %v193, %v198
  %v200 = vmul.f32 %v35, %v175
  %v201 = vsub.f32 %v199, %v200
  %v202 = vmul.f32 %v201, %v33
  %v203 = vadd.f32 %v175, %v202
  %v204 = vadd.f32 %v176, %v203
  %s205 = scalar_lea.vmem %s3, 40
  %206 = vst [vmem:[%s205] sm:$0xff] %v204
  %s207 = scalar_lea.vmem %s0, 24
  %v208 = vld [vmem:[%s207] sm:$0xf]
  %v209 = vunpack.c.l.bf16 %v208
  %s210 = scalar_lea.vmem %s43, 24
  %v211 = vld [vmem:[%s210] sm:$0xf]
  %v212 = vunpack.c.l.bf16 %v211
  %s213 = scalar_lea.vmem %s46, 24
  %v214 = vld [vmem:[%s213] sm:$0xf]
  %v215 = vunpack.c.l.bf16 %v214
  %s216 = scalar_lea.vmem %s49, 24
  %v217 = vld [vmem:[%s216] sm:$0xf]
  %v218 = vunpack.c.l.bf16 %v217
  %v219 = vmul.f32 %v209, %v25
  %v220 = vmul.f32 %v212, %v27
  %v221 = vadd.f32 %v219, %v220
  %v222 = vmul.f32 %v215, %v29
  %v223 = vmul.f32 %v218, %v31
  %v224 = vadd.f32 %v222, %v223
  %v225 = vadd.f32 %v224, %v37
  %v226 = vmul.f32 %v225, %v204
  %v227 = vsub.f32 %v221, %v226
  %v228 = vmul.f32 %v35, %v203
  %v229 = vsub.f32 %v227, %v228
  %v230 = vmul.f32 %v229, %v33
  %v231 = vadd.f32 %v203, %v230
  %v232 = vadd.f32 %v204, %v231
  %s233 = scalar_lea.vmem %s3, 48
  %234 = vst [vmem:[%s233] sm:$0xff] %v232
  %s235 = scalar_lea.vmem %s0, 28
  %v236 = vld [vmem:[%s235] sm:$0xf]
  %v237 = vunpack.c.l.bf16 %v236
  %s238 = scalar_lea.vmem %s43, 28
  %v239 = vld [vmem:[%s238] sm:$0xf]
  %v240 = vunpack.c.l.bf16 %v239
  %s241 = scalar_lea.vmem %s46, 28
  %v242 = vld [vmem:[%s241] sm:$0xf]
  %v243 = vunpack.c.l.bf16 %v242
  %s244 = scalar_lea.vmem %s49, 28
  %v245 = vld [vmem:[%s244] sm:$0xf]
  %v246 = vunpack.c.l.bf16 %v245
  %v247 = vmul.f32 %v237, %v25
  %v248 = vmul.f32 %v240, %v27
  %v249 = vadd.f32 %v247, %v248
  %v250 = vmul.f32 %v243, %v29
  %v251 = vmul.f32 %v246, %v31
  %v252 = vadd.f32 %v250, %v251
  %v253 = vadd.f32 %v252, %v37
  %v254 = vmul.f32 %v253, %v232
  %v255 = vsub.f32 %v249, %v254
  %v256 = vmul.f32 %v35, %v231
  %v257 = vsub.f32 %v255, %v256
  %v258 = vmul.f32 %v257, %v33
  %v259 = vadd.f32 %v231, %v258
  %v260 = vadd.f32 %v232, %v259
  %s261 = scalar_lea.vmem %s3, 56
  %262 = vst [vmem:[%s261] sm:$0xff] %v260
  %263 = vst [vmem:[#allocation2] sm:$0xff] %v260
  %264 = vst [vmem:[%s39] sm:$0xff] %v259
  // Predicated region
  $region18: #{phys_joint_forward.1} parent=0 // pred_check
    %p265 = pneg %p17
  $region19: #{phys_joint_forward.1} parent=0 // pred_check_branch
    %267 = sbr.rel (%p265) target = $region21
  $region20: #{phys_joint_forward.1} parent=0 // pred_region
    %v268 = vmul.f32 %v259, 60.0
    %269 = vst [vmem:[%s4] sm:$0xff] %v260
    %s270 = scalar_lea.vmem %s4, 8
    %271 = vst [vmem:[%s270] sm:$0xff] %v268
    %v272 = vmul.f32 %v260, %v25
    %273 = vst [vmem:[%s5] sm:$0xff] %v272
    %v274 = vmul.f32 %v260, %v27
    %s275 = scalar_lea.vmem %s5, 8
    %276 = vst [vmem:[%s275] sm:$0xff] %v274
    %v277 = vmul.f32 %v268, %v25
    %s278 = scalar_lea.vmem %s5, 16
    %279 = vst [vmem:[%s278] sm:$0xff] %v277
    %v280 = vmul.f32 %v268, %v27
    %s281 = scalar_lea.vmem %s5, 24
    %282 = vst [vmem:[%s281] sm:$0xff] %v280
  $region21: #{phys_joint_forward.1} parent=0 // pred_fallthru
    _
  // Predicated region
  $region22: #{phys_joint_forward.1} parent=0 // pred_check
    _
  $region23: #{phys_joint_forward.1} parent=0 // pred_check_branch
    %284 = sbr.rel (0) target = $region25
  $region24: #{phys_joint_forward.1} parent=0 // pred_region
    _
  $region25: #{phys_joint_forward.1} parent=0 // pred_fallthru
    _
  // Predicated region
  $region26: #{phys_joint_forward.1} parent=0 // pred_check
    _
  $region27: #{phys_joint_forward.1} parent=0 // pred_check_branch
    %286 = sbr.rel (0) target = $region29
  $region28: #{phys_joint_forward.1} parent=0 // pred_region
    _
  $region29: #{phys_joint_forward.1} parent=0 // pred_fallthru
    _
  // Predicated region
  $region30: #{phys_joint_forward.1} parent=0 // pred_check
    _
  $region31: #{phys_joint_forward.1} parent=0 // pred_check_branch
    %288 = sbr.rel (0) target = $region33
  $region32: #{phys_joint_forward.1} parent=0 // pred_region
    _
  $region33: #{phys_joint_forward.1} parent=0 // pred_fallthru
    _
  // Predicated region
  $region34: #{phys_joint_forward.1} parent=0 // pred_check
    _
  $region35: #{phys_joint_forward.1} parent=0 // pred_check_branch
    %290 = sbr.rel (0) target = $region37
  $region36: #{phys_joint_forward.1} parent=0 // pred_region
    _
  $region37: #{phys_joint_forward.1} parent=0 // pred_fallthru
    _
  // Predicated region
  $region38: #{phys_joint_forward.1} parent=0 // pred_check
    _
  $region39: #{phys_joint_forward.1} parent=0 // pred_check_branch
    %292 = sbr.rel (0) target = $region41
  $region40: #{phys_joint_forward.1} parent=0 // pred_region
    _
  $region41: #{phys_joint_forward.1} parent=0 // pred_fallthru
    _
  // Predicated region
  $region42: #{phys_joint_forward.1} parent=0 // pred_check
    _
  $region43: #{phys_joint_forward.1} parent=0 // pred_check_branch
    %294 = sbr.rel (0) target = $region45
  $region44: #{phys_joint_forward.1} parent=0 // pred_region
    _
  $region45: #{phys_joint_forward.1} parent=0 // pred_fallthru
    _

</llo_original>
